<compile_context>
chip_gen: v6e
topology: v6e:2x2x1
jax: 0.10.0
libtpu: 0.0.40
codegen_flags: <defaults>
</compile_context>

<pallas_src>
import functools

import jax
import jax.numpy as jnp
from jax import lax
from jax.experimental import pallas as pl
from jax.experimental.pallas import tpu as pltpu

LN_EPS = 1e-5


def _layer_norm_lastdim(x, gamma, beta):
    mean = jnp.mean(x, axis=-1, keepdims=True)
    xc = x - mean
    var = jnp.mean(xc * xc, axis=-1, keepdims=True)
    inv = lax.rsqrt(var + LN_EPS)
    return xc * inv * gamma + beta


def variance_predictor_kernel(
    x_ref,                            # (R, idim)  flattened (batch*time) input rows
    rmask_ref,                        # (R, 1)     1.0 on real frames, 0.0 on halo rows
    w1_ref, b1_ref, g1_ref, be1_ref,  # conv layer 1 params
    w2_ref, b2_ref, g2_ref, be2_ref,  # conv layer 2 params
    wl_ref, bl_ref,                   # final linear params: (1, C), (1, 1)
    out_ref,                          # (1, 1, R)  lane-dense output row
    *, K, pad, matmul_dtype,
):
    R = x_ref.shape[0]

    def shift_rows(a, offset):
        # b[p] = a[p + offset], zero-filled at the block ends.  The first/last `pad` rows
        # of the block are per-element zero-halo rows, so the fill equals the true values.
        if offset == 0:
            return a
        fill = jnp.zeros((abs(offset),) + a.shape[1:], a.dtype)
        if offset > 0:
            return jnp.concatenate([a[offset:], fill], axis=0)
        return jnp.concatenate([fill, a[: a.shape[0] + offset]], axis=0)

    def conv(a, w_ref):
        # Conv1d(K, pad) as K row-shifted MXU matmuls; accumulator starts from tap 0.
        acc = None
        for j in range(K):
            tap = shift_rows(a, j - pad)
            if matmul_dtype is not None:
                tap = tap.astype(matmul_dtype)       # weights pre-cast in the wrapper
            part = jnp.dot(tap, w_ref[j], preferred_element_type=jnp.float32)
            acc = part if acc is None else acc + part
        return acc

    x = x_ref[...]                                           # (R, idim) f32

    # ---- layer 1: conv -> ReLU -> LayerNorm over channels
    h = jnp.maximum(conv(x, w1_ref) + b1_ref[...], 0.0)
    h = _layer_norm_lastdim(h, g1_ref[...], be1_ref[...])
    # TODO(synk): dropout omitted (inference/eval semantics).
    h = h * rmask_ref[...]        # zero halo rows -> correct zero padding for layer 2

    # ---- layer 2
    h2 = jnp.maximum(conv(h, w2_ref) + b2_ref[...], 0.0)
    h2 = _layer_norm_lastdim(h2, g2_ref[...], be2_ref[...])

    # ---- final Linear(C -> 1) on the VPU (mul + cross-lane reduce); MXU stays free
    y = jnp.sum(h2 * wl_ref[...], axis=-1, keepdims=True) + bl_ref[...]   # (R, 1)
    out_ref[...] = y.reshape(1, 1, R)   # lane-dense store (sublane->lane relayout)


def variance_predictor(x, params, mask=None, *, kernel_size=3, block_b=None,
                       matmul_dtype=None):
    """x: (B, T, idim) float32; mask: (B, T, 1) / (B, T) / None. Returns (B, T, 1)."""
    B, T, idim = x.shape
    K = kernel_size
    assert K % 2 == 1, "kernel_size must be odd (same-length Conv1d)"
    pad = (K - 1) // 2
    C = params["w1"].shape[-1]

    # Per-element padded row count (sublane aligned): [pad zeros | T real | trailing 0s].
    Tp = ((T + 2 * pad + 7) // 8) * 8

    if block_b is None:
        # ~512 matmul rows per step keeps the v6e/v7x MXU reasonably filled.
        block_b = max(1, min(B, 512 // Tp))
        # Bound per-step VMEM (double-buffered input block + a few f32 (R, C) temps).
        def footprint(bb):
            return 4 * bb * Tp * (2 * idim + 8 * C)
        while block_b > 1 and footprint(block_b) > 40 * 1024 * 1024:
            block_b -= 1
        # v7x has 2 TensorCores: prefer >=2 grid steps when it doesn't starve the MXU.
        if B > 1:
            half = pl.cdiv(B, 2)
            if half * Tp >= 256:
                block_b = min(block_b, half)

    G = pl.cdiv(B, block_b)
    Bp = G * block_b
    R = block_b * Tp

    # ---- wrapper-side layout: flatten batch into the row axis, pad time with zeros.
    xp = x.astype(jnp.float32)
    if Bp != B:
        xp = jnp.pad(xp, ((0, Bp - B), (0, 0), (0, 0)))
    xp = jnp.pad(xp, ((0, 0), (pad, Tp - T - pad), (0, 0)))        # (Bp, Tp, idim)
    x_flat = xp.reshape(Bp * Tp, idim)

    local = jnp.arange(Tp, dtype=jnp.int32)
    valid = ((local >= pad) & (local < pad + T)).astype(jnp.float32)
    row_mask = jnp.tile(valid, Bp).reshape(Bp * Tp, 1)

    # Hoisted weight casts for the bf16 matmul path (f32 accumulate in-kernel).
    w1 = params["w1"]
    w2 = params["w2"]
    if matmul_dtype is not None:
        w1 = w1.astype(matmul_dtype)
        w2 = w2.astype(matmul_dtype)
    wl_row = params["wl"].reshape(1, C).astype(jnp.float32)

    def full_spec(shape):
        nd = len(shape)
        return pl.BlockSpec(shape, lambda g, _nd=nd: (0,) * _nd)

    kernel = functools.partial(
        variance_predictor_kernel, K=K, pad=pad, matmul_dtype=matmul_dtype)

    rows_total = Bp * Tp
    w_bytes = int(w1.size) * w1.dtype.itemsize + int(w2.size) * w2.dtype.itemsize
    cost = pl.CostEstimate(
        flops=int(2 * rows_total * K * C * (idim + C) + 2 * rows_total * C),
        transcendentals=int(2 * rows_total),
        bytes_accessed=int(4 * rows_total * (idim + 1 + 1) + w_bytes + 4 * (7 * C + 1)),
    )

    out = pl.pallas_call(
        kernel,
        out_shape=jax.ShapeDtypeStruct((G, 1, R), jnp.float32),
        grid=(G,),
        in_specs=[
            pl.BlockSpec((R, idim), lambda g: (g, 0)),
            pl.BlockSpec((R, 1), lambda g: (g, 0)),
            full_spec((K, idim, C)), full_spec((1, C)), full_spec((1, C)), full_spec((1, C)),
            full_spec((K, C, C)),    full_spec((1, C)), full_spec((1, C)), full_spec((1, C)),
            full_spec((1, C)),       full_spec((1, 1)),
        ],
        out_specs=pl.BlockSpec((1, 1, R), lambda g: (g, 0, 0)),
        compiler_params=pltpu.CompilerParams(
            dimension_semantics=("parallel",),
            vmem_limit_bytes=48 * 1024 * 1024,   # > 32 MiB default, < v7x 64 MiB physical
        ),
        cost_estimate=cost,
    )(x_flat, row_mask,
      w1, params["b1"], params["g1"], params["be1"],
      w2, params["b2"], params["g2"], params["be2"],
      wl_row, params["bl"])

    y = out.reshape(Bp, Tp)[:B, pad:pad + T].reshape(B, T, 1)
    if mask is not None:
        y = y * mask.reshape(B, T, 1).astype(y.dtype)
    return y


def _reference_forward(x, params, mask, kernel_size=3):
    """Pure-JAX reference matching the PyTorch forward (eval mode)."""
    pad = (kernel_size - 1) // 2
    h = x
    layers = [
        (params["w1"], params["b1"], params["g1"], params["be1"]),
        (params["w2"], params["b2"], params["g2"], params["be2"]),
    ]
    for (w, b, g, be) in layers:
        T = h.shape[1]
        hp = jnp.pad(h, ((0, 0), (pad, pad), (0, 0)))
        conv = sum(jnp.einsum("btc,cd->btd", hp[:, j:j + T], w[j])
                   for j in range(w.shape[0])) + b[0]
        conv = jnp.maximum(conv, 0.0)
        mean = conv.mean(-1, keepdims=True)
        var = ((conv - mean) ** 2).mean(-1, keepdims=True)
        h = (conv - mean) * lax.rsqrt(var + LN_EPS) * g[0] + be[0]
    y = h @ params["wl"] + params["bl"][0]
    return y * mask


if __name__ == "__main__":
    key = jax.random.PRNGKey(0)
    B, T, idim, C, K = 2, 16, 32, 64, 3
    keys = jax.random.split(key, 8)

    x = jax.random.normal(keys[0], (B, T, idim), jnp.float32)

    params = dict(
        # conv weights stored as (K, Cin, Cout) for the shifted-matmul formulation
        w1=0.1 * jax.random.normal(keys[1], (K, idim, C), jnp.float32),
        b1=0.1 * jax.random.normal(keys[2], (1, C), jnp.float32),
        g1=jnp.ones((1, C), jnp.float32),    # LayerNorm weight init (PyTorch default)
        be1=jnp.zeros((1, C), jnp.float32),  # LayerNorm bias init
        w2=0.1 * jax.random.normal(keys[3], (K, C, C), jnp.float32),
        b2=0.1 * jax.random.normal(keys[4], (1, C), jnp.float32),
        g2=jnp.ones((1, C), jnp.float32),
        be2=jnp.zeros((1, C), jnp.float32),
        wl=0.1 * jax.random.normal(keys[5], (C, 1), jnp.float32),
        bl=0.1 * jax.random.normal(keys[6], (1, 1), jnp.float32),
    )

    # mask: second sequence has 4 padded frames
    lengths = jnp.array([T, T - 4])
    mask = (jnp.arange(T)[None, :] < lengths[:, None]).astype(jnp.float32)[..., None]

    ref = _reference_forward(x, params, mask, kernel_size=K)

    # f32 path, default blocking (exact check)
    out = variance_predictor(x, params, mask, kernel_size=K)
    out = jax.block_until_ready(out)
    assert out.shape == (B, T, 1)
    assert jnp.allclose(out, ref, atol=1e-4, rtol=1e-4), float(jnp.max(jnp.abs(out - ref)))

    # f32 path, multi-step grid (block_b=1 -> 2 grid steps)
    out_g2 = variance_predictor(x, params, mask, kernel_size=K, block_b=1)
    out_g2 = jax.block_until_ready(out_g2)
    assert jnp.allclose(out_g2, ref, atol=1e-4, rtol=1e-4)

    # f32 path, B not divisible by block_b (exercises batch padding)
    x3 = jax.random.normal(keys[7], (3, T, idim), jnp.float32)
    ones_mask = jnp.ones((3, T, 1), jnp.float32)
    ref3 = _reference_forward(x3, params, ones_mask, kernel_size=K)
    out3 = variance_predictor(x3, params, None, kernel_size=K, block_b=2)
    out3 = jax.block_until_ready(out3)
    assert jnp.allclose(out3, ref3, atol=1e-4, rtol=1e-4)

    # bf16 matmul operands with f32 accumulate (v6e/v7x MXU path) — operand-rounding check
    out_bf16 = variance_predictor(x, params, mask, kernel_size=K,
                                  matmul_dtype=jnp.bfloat16)
    out_bf16 = jax.block_until_ready(out_bf16)
    assert jnp.allclose(out_bf16, ref, atol=5e-2, rtol=5e-2), \
        float(jnp.max(jnp.abs(out_bf16 - ref)))

    print("KERNEL_OK")
</pallas_src>

<mosaic_0001>
module attributes {stable_mosaic.version = 11 : i64} {
  func.func @variance_predictor_kernel(%arg0: i32, %arg1: memref<48x32xf32, #tpu.memory_space<vmem>>, %arg2: memref<48x1xf32, #tpu.memory_space<vmem>>, %arg3: memref<3x32x64xf32, #tpu.memory_space<vmem>>, %arg4: memref<1x64xf32, #tpu.memory_space<vmem>>, %arg5: memref<1x64xf32, #tpu.memory_space<vmem>>, %arg6: memref<1x64xf32, #tpu.memory_space<vmem>>, %arg7: memref<3x64x64xf32, #tpu.memory_space<vmem>>, %arg8: memref<1x64xf32, #tpu.memory_space<vmem>>, %arg9: memref<1x64xf32, #tpu.memory_space<vmem>>, %arg10: memref<1x64xf32, #tpu.memory_space<vmem>>, %arg11: memref<1x64xf32, #tpu.memory_space<vmem>>, %arg12: memref<1x1xf32, #tpu.memory_space<vmem>>, %arg13: memref<1x1x48xf32, #tpu.memory_space<vmem>>) attributes {dimension_semantics = [#tpu.dimension_semantics<parallel>], iteration_bounds = array<i64: 1>, scalar_prefetch = 0 : i64, scratch_operands = 0 : i64, tpu.core_type = #tpu.core_type<tc>, window_params = [{transform_indices = @transform_0, window_bounds = array<i64: 48, 32>}, {transform_indices = @transform_1, window_bounds = array<i64: 48, 1>}, {pipeline_mode = #tpu.pipeline_mode<synchronous>, transform_indices = @transform_2, window_bounds = array<i64: 3, 32, 64>}, {pipeline_mode = #tpu.pipeline_mode<synchronous>, transform_indices = @transform_3, window_bounds = array<i64: 1, 64>}, {pipeline_mode = #tpu.pipeline_mode<synchronous>, transform_indices = @transform_4, window_bounds = array<i64: 1, 64>}, {pipeline_mode = #tpu.pipeline_mode<synchronous>, transform_indices = @transform_5, window_bounds = array<i64: 1, 64>}, {pipeline_mode = #tpu.pipeline_mode<synchronous>, transform_indices = @transform_6, window_bounds = array<i64: 3, 64, 64>}, {pipeline_mode = #tpu.pipeline_mode<synchronous>, transform_indices = @transform_7, window_bounds = array<i64: 1, 64>}, {pipeline_mode = #tpu.pipeline_mode<synchronous>, transform_indices = @transform_8, window_bounds = array<i64: 1, 64>}, {pipeline_mode = #tpu.pipeline_mode<synchronous>, transform_indices = @transform_9, window_bounds = array<i64: 1, 64>}, {pipeline_mode = #tpu.pipeline_mode<synchronous>, transform_indices = @transform_10, window_bounds = array<i64: 1, 64>}, {pipeline_mode = #tpu.pipeline_mode<synchronous>, transform_indices = @transform_11, window_bounds = array<i64: 1, 1>}, {transform_indices = @transform_12, window_bounds = array<i64: 1, 1, 48>}]} {
    %c0 = arith.constant 0 : index
    %c0_0 = arith.constant 0 : index
    %0 = vector.load %arg1[%c0, %c0_0] : memref<48x32xf32, #tpu.memory_space<vmem>>, vector<48x32xf32>
    %cst = arith.constant 0.000000e+00 : f32
    %1 = vector.broadcast %cst : f32 to vector<1x32xf32>
    %2 = vector.extract_strided_slice %0 {offsets = [0, 0], sizes = [47, 32], strides = [1, 1]} : vector<48x32xf32> to vector<47x32xf32>
    %3 = tpu.concatenate %1, %2 in 0 : vector<1x32xf32>, vector<47x32xf32> -> vector<48x32xf32>
    %c0_1 = arith.constant 0 : index
    %c0_2 = arith.constant 0 : index
    %c0_3 = arith.constant 0 : index
    %4 = vector.load %arg3[%c0_1, %c0_2, %c0_3] : memref<3x32x64xf32, #tpu.memory_space<vmem>>, vector<1x32x64xf32>
    %5 = vector.shape_cast %4 : vector<1x32x64xf32> to vector<32x64xf32>
    %cst_4 = arith.constant dense<0.000000e+00> : vector<48x64xf32>
    %6 = tpu.matmul %3, %5, %cst_4 {dimension_numbers = #tpu.dot_dimension_numbers<[1], [0], [0], [1], [0, 0, 1, 1], [], []>} : vector<48x32xf32>, vector<32x64xf32>, vector<48x64xf32> -> vector<48x64xf32>
    %c1 = arith.constant 1 : index
    %c0_5 = arith.constant 0 : index
    %c0_6 = arith.constant 0 : index
    %7 = vector.load %arg3[%c1, %c0_5, %c0_6] : memref<3x32x64xf32, #tpu.memory_space<vmem>>, vector<1x32x64xf32>
    %8 = vector.shape_cast %7 : vector<1x32x64xf32> to vector<32x64xf32>
    %cst_7 = arith.constant dense<0.000000e+00> : vector<48x64xf32>
    %9 = tpu.matmul %0, %8, %cst_7 {dimension_numbers = #tpu.dot_dimension_numbers<[1], [0], [0], [1], [0, 0, 1, 1], [], []>} : vector<48x32xf32>, vector<32x64xf32>, vector<48x64xf32> -> vector<48x64xf32>
    %10 = arith.addf %6, %9 : vector<48x64xf32>
    %cst_8 = arith.constant 0.000000e+00 : f32
    %11 = vector.broadcast %cst_8 : f32 to vector<1x32xf32>
    %12 = vector.extract_strided_slice %0 {offsets = [1, 0], sizes = [47, 32], strides = [1, 1]} : vector<48x32xf32> to vector<47x32xf32>
    %13 = tpu.concatenate %12, %11 in 0 : vector<47x32xf32>, vector<1x32xf32> -> vector<48x32xf32>
    %c2 = arith.constant 2 : index
    %c0_9 = arith.constant 0 : index
    %c0_10 = arith.constant 0 : index
    %14 = vector.load %arg3[%c2, %c0_9, %c0_10] : memref<3x32x64xf32, #tpu.memory_space<vmem>>, vector<1x32x64xf32>
    %15 = vector.shape_cast %14 : vector<1x32x64xf32> to vector<32x64xf32>
    %cst_11 = arith.constant dense<0.000000e+00> : vector<48x64xf32>
    %16 = tpu.matmul %13, %15, %cst_11 {dimension_numbers = #tpu.dot_dimension_numbers<[1], [0], [0], [1], [0, 0, 1, 1], [], []>} : vector<48x32xf32>, vector<32x64xf32>, vector<48x64xf32> -> vector<48x64xf32>
    %17 = arith.addf %10, %16 : vector<48x64xf32>
    %c0_12 = arith.constant 0 : index
    %c0_13 = arith.constant 0 : index
    %18 = vector.load %arg4[%c0_12, %c0_13] : memref<1x64xf32, #tpu.memory_space<vmem>>, vector<1x64xf32>
    %19 = vector.broadcast %18 : vector<1x64xf32> to vector<48x64xf32>
    %20 = arith.addf %17, %19 : vector<48x64xf32>
    %cst_14 = arith.constant 0.000000e+00 : f32
    %21 = vector.broadcast %cst_14 : f32 to vector<48x64xf32>
    %22 = arith.maximumf %20, %21 : vector<48x64xf32>
    %c0_15 = arith.constant 0 : index
    %c0_16 = arith.constant 0 : index
    %23 = vector.load %arg5[%c0_15, %c0_16] : memref<1x64xf32, #tpu.memory_space<vmem>>, vector<1x64xf32>
    %c0_17 = arith.constant 0 : index
    %c0_18 = arith.constant 0 : index
    %24 = vector.load %arg6[%c0_17, %c0_18] : memref<1x64xf32, #tpu.memory_space<vmem>>, vector<1x64xf32>
    %cst_19 = arith.constant dense<0.000000e+00> : vector<48xf32>
    %25 = vector.multi_reduction <add>, %22, %cst_19 [1] : vector<48x64xf32> to vector<48xf32>
    %26 = vector.shape_cast %25 : vector<48xf32> to vector<48x1xf32>
    %cst_20 = arith.constant 6.400000e+01 : f32
    %27 = vector.broadcast %cst_20 : f32 to vector<48x1xf32>
    %28 = arith.divf %26, %27 : vector<48x1xf32>
    %29 = vector.broadcast %28 : vector<48x1xf32> to vector<48x64xf32>
    %30 = arith.subf %22, %29 : vector<48x64xf32>
    %31 = arith.mulf %30, %30 : vector<48x64xf32>
    %cst_21 = arith.constant dense<0.000000e+00> : vector<48xf32>
    %32 = vector.multi_reduction <add>, %31, %cst_21 [1] : vector<48x64xf32> to vector<48xf32>
    %33 = vector.shape_cast %32 : vector<48xf32> to vector<48x1xf32>
    %cst_22 = arith.constant 6.400000e+01 : f32
    %34 = vector.broadcast %cst_22 : f32 to vector<48x1xf32>
    %35 = arith.divf %33, %34 : vector<48x1xf32>
    %cst_23 = arith.constant 9.99999974E-6 : f32
    %36 = vector.broadcast %cst_23 : f32 to vector<48x1xf32>
    %37 = arith.addf %35, %36 : vector<48x1xf32>
    %38 = math.rsqrt %37 : vector<48x1xf32>
    %39 = vector.broadcast %38 : vector<48x1xf32> to vector<48x64xf32>
    %40 = arith.mulf %30, %39 : vector<48x64xf32>
    %41 = vector.broadcast %23 : vector<1x64xf32> to vector<48x64xf32>
    %42 = arith.mulf %40, %41 : vector<48x64xf32>
    %43 = vector.broadcast %24 : vector<1x64xf32> to vector<48x64xf32>
    %44 = arith.addf %42, %43 : vector<48x64xf32>
    %c0_24 = arith.constant 0 : index
    %c0_25 = arith.constant 0 : index
    %45 = vector.load %arg2[%c0_24, %c0_25] : memref<48x1xf32, #tpu.memory_space<vmem>>, vector<48x1xf32>
    %46 = vector.broadcast %45 : vector<48x1xf32> to vector<48x64xf32>
    %47 = arith.mulf %44, %46 : vector<48x64xf32>
    %cst_26 = arith.constant 0.000000e+00 : f32
    %48 = vector.broadcast %cst_26 : f32 to vector<1x64xf32>
    %49 = vector.extract_strided_slice %47 {offsets = [0, 0], sizes = [47, 64], strides = [1, 1]} : vector<48x64xf32> to vector<47x64xf32>
    %50 = tpu.concatenate %48, %49 in 0 : vector<1x64xf32>, vector<47x64xf32> -> vector<48x64xf32>
    %c0_27 = arith.constant 0 : index
    %c0_28 = arith.constant 0 : index
    %c0_29 = arith.constant 0 : index
    %51 = vector.load %arg7[%c0_27, %c0_28, %c0_29] : memref<3x64x64xf32, #tpu.memory_space<vmem>>, vector<1x64x64xf32>
    %52 = vector.shape_cast %51 : vector<1x64x64xf32> to vector<64x64xf32>
    %cst_30 = arith.constant dense<0.000000e+00> : vector<48x64xf32>
    %53 = tpu.matmul %50, %52, %cst_30 {dimension_numbers = #tpu.dot_dimension_numbers<[1], [0], [0], [1], [0, 0, 1, 1], [], []>} : vector<48x64xf32>, vector<64x64xf32>, vector<48x64xf32> -> vector<48x64xf32>
    %c1_31 = arith.constant 1 : index
    %c0_32 = arith.constant 0 : index
    %c0_33 = arith.constant 0 : index
    %54 = vector.load %arg7[%c1_31, %c0_32, %c0_33] : memref<3x64x64xf32, #tpu.memory_space<vmem>>, vector<1x64x64xf32>
    %55 = vector.shape_cast %54 : vector<1x64x64xf32> to vector<64x64xf32>
    %cst_34 = arith.constant dense<0.000000e+00> : vector<48x64xf32>
    %56 = tpu.matmul %47, %55, %cst_34 {dimension_numbers = #tpu.dot_dimension_numbers<[1], [0], [0], [1], [0, 0, 1, 1], [], []>} : vector<48x64xf32>, vector<64x64xf32>, vector<48x64xf32> -> vector<48x64xf32>
    %57 = arith.addf %53, %56 : vector<48x64xf32>
    %cst_35 = arith.constant 0.000000e+00 : f32
    %58 = vector.broadcast %cst_35 : f32 to vector<1x64xf32>
    %59 = vector.extract_strided_slice %47 {offsets = [1, 0], sizes = [47, 64], strides = [1, 1]} : vector<48x64xf32> to vector<47x64xf32>
    %60 = tpu.concatenate %59, %58 in 0 : vector<47x64xf32>, vector<1x64xf32> -> vector<48x64xf32>
    %c2_36 = arith.constant 2 : index
    %c0_37 = arith.constant 0 : index
    %c0_38 = arith.constant 0 : index
    %61 = vector.load %arg7[%c2_36, %c0_37, %c0_38] : memref<3x64x64xf32, #tpu.memory_space<vmem>>, vector<1x64x64xf32>
    %62 = vector.shape_cast %61 : vector<1x64x64xf32> to vector<64x64xf32>
    %cst_39 = arith.constant dense<0.000000e+00> : vector<48x64xf32>
    %63 = tpu.matmul %60, %62, %cst_39 {dimension_numbers = #tpu.dot_dimension_numbers<[1], [0], [0], [1], [0, 0, 1, 1], [], []>} : vector<48x64xf32>, vector<64x64xf32>, vector<48x64xf32> -> vector<48x64xf32>
    %64 = arith.addf %57, %63 : vector<48x64xf32>
    %c0_40 = arith.constant 0 : index
    %c0_41 = arith.constant 0 : index
    %65 = vector.load %arg8[%c0_40, %c0_41] : memref<1x64xf32, #tpu.memory_space<vmem>>, vector<1x64xf32>
    %66 = vector.broadcast %65 : vector<1x64xf32> to vector<48x64xf32>
    %67 = arith.addf %64, %66 : vector<48x64xf32>
    %cst_42 = arith.constant 0.000000e+00 : f32
    %68 = vector.broadcast %cst_42 : f32 to vector<48x64xf32>
    %69 = arith.maximumf %67, %68 : vector<48x64xf32>
    %c0_43 = arith.constant 0 : index
    %c0_44 = arith.constant 0 : index
    %70 = vector.load %arg9[%c0_43, %c0_44] : memref<1x64xf32, #tpu.memory_space<vmem>>, vector<1x64xf32>
    %c0_45 = arith.constant 0 : index
    %c0_46 = arith.constant 0 : index
    %71 = vector.load %arg10[%c0_45, %c0_46] : memref<1x64xf32, #tpu.memory_space<vmem>>, vector<1x64xf32>
    %cst_47 = arith.constant dense<0.000000e+00> : vector<48xf32>
    %72 = vector.multi_reduction <add>, %69, %cst_47 [1] : vector<48x64xf32> to vector<48xf32>
    %73 = vector.shape_cast %72 : vector<48xf32> to vector<48x1xf32>
    %cst_48 = arith.constant 6.400000e+01 : f32
    %74 = vector.broadcast %cst_48 : f32 to vector<48x1xf32>
    %75 = arith.divf %73, %74 : vector<48x1xf32>
    %76 = vector.broadcast %75 : vector<48x1xf32> to vector<48x64xf32>
    %77 = arith.subf %69, %76 : vector<48x64xf32>
    %78 = arith.mulf %77, %77 : vector<48x64xf32>
    %cst_49 = arith.constant dense<0.000000e+00> : vector<48xf32>
    %79 = vector.multi_reduction <add>, %78, %cst_49 [1] : vector<48x64xf32> to vector<48xf32>
    %80 = vector.shape_cast %79 : vector<48xf32> to vector<48x1xf32>
    %cst_50 = arith.constant 6.400000e+01 : f32
    %81 = vector.broadcast %cst_50 : f32 to vector<48x1xf32>
    %82 = arith.divf %80, %81 : vector<48x1xf32>
    %cst_51 = arith.constant 9.99999974E-6 : f32
    %83 = vector.broadcast %cst_51 : f32 to vector<48x1xf32>
    %84 = arith.addf %82, %83 : vector<48x1xf32>
    %85 = math.rsqrt %84 : vector<48x1xf32>
    %86 = vector.broadcast %85 : vector<48x1xf32> to vector<48x64xf32>
    %87 = arith.mulf %77, %86 : vector<48x64xf32>
    %88 = vector.broadcast %70 : vector<1x64xf32> to vector<48x64xf32>
    %89 = arith.mulf %87, %88 : vector<48x64xf32>
    %90 = vector.broadcast %71 : vector<1x64xf32> to vector<48x64xf32>
    %91 = arith.addf %89, %90 : vector<48x64xf32>
    %c0_52 = arith.constant 0 : index
    %c0_53 = arith.constant 0 : index
    %92 = vector.load %arg11[%c0_52, %c0_53] : memref<1x64xf32, #tpu.memory_space<vmem>>, vector<1x64xf32>
    %93 = vector.broadcast %92 : vector<1x64xf32> to vector<48x64xf32>
    %94 = arith.mulf %91, %93 : vector<48x64xf32>
    %cst_54 = arith.constant dense<0.000000e+00> : vector<48xf32>
    %95 = vector.multi_reduction <add>, %94, %cst_54 [1] : vector<48x64xf32> to vector<48xf32>
    %96 = vector.shape_cast %95 : vector<48xf32> to vector<48x1xf32>
    %c0_55 = arith.constant 0 : index
    %c0_56 = arith.constant 0 : index
    %97 = vector.load %arg12[%c0_55, %c0_56] : memref<1x1xf32, #tpu.memory_space<vmem>>, vector<1x1xf32>
    %98 = vector.broadcast %97 : vector<1x1xf32> to vector<48x1xf32>
    %99 = arith.addf %96, %98 : vector<48x1xf32>
    %100 = vector.shape_cast %99 : vector<48x1xf32> to vector<1x1x48xf32>
    %c0_57 = arith.constant 0 : index
    %c0_58 = arith.constant 0 : index
    %c0_59 = arith.constant 0 : index
    %101 = vector.load %arg13[%c0_57, %c0_58, %c0_59] : memref<1x1x48xf32, #tpu.memory_space<vmem>>, vector<1x1x48xf32>
    tpu.vector_store %arg13[%c0_57, %c0_58, %c0_59], %100 {strides = array<i32>} : memref<1x1x48xf32, #tpu.memory_space<vmem>>, vector<1x1x48xf32>,
    return
  }
  func.func @transform_0(%arg0: i32) -> (i32, i32) {
    %c0_i32 = arith.constant 0 : i32
    %c0_i32_0 = arith.constant 0 : i32
    return %arg0, %c0_i32 : i32, i32
  }
  func.func @transform_1(%arg0: i32) -> (i32, i32) {
    %c0_i32 = arith.constant 0 : i32
    %c0_i32_0 = arith.constant 0 : i32
    return %arg0, %c0_i32 : i32, i32
  }
  func.func @transform_2(%arg0: i32) -> (i32, i32, i32) {
    %c0_i32 = arith.constant 0 : i32
    %c0_i32_0 = arith.constant 0 : i32
    %c0_i32_1 = arith.constant 0 : i32
    %c0_i32_2 = arith.constant 0 : i32
    return %c0_i32, %c0_i32_0, %c0_i32_1 : i32, i32, i32
  }
  func.func @transform_3(%arg0: i32) -> (i32, i32) {
    %c0_i32 = arith.constant 0 : i32
    %c0_i32_0 = arith.constant 0 : i32
    %c0_i32_1 = arith.constant 0 : i32
    return %c0_i32, %c0_i32_0 : i32, i32
  }
  func.func @transform_4(%arg0: i32) -> (i32, i32) {
    %c0_i32 = arith.constant 0 : i32
    %c0_i32_0 = arith.constant 0 : i32
    %c0_i32_1 = arith.constant 0 : i32
    return %c0_i32, %c0_i32_0 : i32, i32
  }
  func.func @transform_5(%arg0: i32) -> (i32, i32) {
    %c0_i32 = arith.constant 0 : i32
    %c0_i32_0 = arith.constant 0 : i32
    %c0_i32_1 = arith.constant 0 : i32
    return %c0_i32, %c0_i32_0 : i32, i32
  }
  func.func @transform_6(%arg0: i32) -> (i32, i32, i32) {
    %c0_i32 = arith.constant 0 : i32
    %c0_i32_0 = arith.constant 0 : i32
    %c0_i32_1 = arith.constant 0 : i32
    %c0_i32_2 = arith.constant 0 : i32
    return %c0_i32, %c0_i32_0, %c0_i32_1 : i32, i32, i32
  }
  func.func @transform_7(%arg0: i32) -> (i32, i32) {
    %c0_i32 = arith.constant 0 : i32
    %c0_i32_0 = arith.constant 0 : i32
    %c0_i32_1 = arith.constant 0 : i32
    return %c0_i32, %c0_i32_0 : i32, i32
  }
  func.func @transform_8(%arg0: i32) -> (i32, i32) {
    %c0_i32 = arith.constant 0 : i32
    %c0_i32_0 = arith.constant 0 : i32
    %c0_i32_1 = arith.constant 0 : i32
    return %c0_i32, %c0_i32_0 : i32, i32
  }
  func.func @transform_9(%arg0: i32) -> (i32, i32) {
    %c0_i32 = arith.constant 0 : i32
    %c0_i32_0 = arith.constant 0 : i32
    %c0_i32_1 = arith.constant 0 : i32
    return %c0_i32, %c0_i32_0 : i32, i32
  }
  func.func @transform_10(%arg0: i32) -> (i32, i32) {
    %c0_i32 = arith.constant 0 : i32
    %c0_i32_0 = arith.constant 0 : i32
    %c0_i32_1 = arith.constant 0 : i32
    return %c0_i32, %c0_i32_0 : i32, i32
  }
  func.func @transform_11(%arg0: i32) -> (i32, i32) {
    %c0_i32 = arith.constant 0 : i32
    %c0_i32_0 = arith.constant 0 : i32
    %c0_i32_1 = arith.constant 0 : i32
    return %c0_i32, %c0_i32_0 : i32, i32
  }
  func.func @transform_12(%arg0: i32) -> (i32, i32, i32) {
    %c0_i32 = arith.constant 0 : i32
    %c0_i32_0 = arith.constant 0 : i32
    %c0_i32_1 = arith.constant 0 : i32
    return %arg0, %c0_i32, %c0_i32_0 : i32, i32, i32
  }
}

</mosaic_0001>

<llo_original>
// kernel: tpu_custom_call.1
$region0: #{tpu_custom_call.1}
  #allocation0 [shape = 'u32[]', space=smem, size = 0x4, offset = 0x4, fixed_abs, tag = 'smem constant byte address 0x4 - core index']
  #allocation1 [shape = 'u32[144,128]{1,0:T(1,128)}', space=vmem, size = 0x12000, scoped, tag = 'internal scratch']
  #allocation2 [shape = 'f32[1,1]{1,0:T(1,128)S(1)}', space=vmem, size = 0x200, scoped, tag = 'scoped memory for tpu_custom_call.1']
  %s0 = inlined_call_operand.vmem [shape: f32[48,32], index: 0, kind: input, shape index: {}]
  %s1 = inlined_call_operand.vmem [shape: f32[48,1], index: 1, kind: input, shape index: {}]
  %s2 = inlined_call_operand.vmem [shape: f32[3,32,64], index: 2, kind: input, shape index: {}]
  %s3 = inlined_call_operand.vmem [shape: f32[1,64], index: 3, kind: input, shape index: {}]
  %s4 = inlined_call_operand.vmem [shape: f32[1,64], index: 4, kind: input, shape index: {}]
  %s5 = inlined_call_operand.vmem [shape: f32[1,64], index: 5, kind: input, shape index: {}]
  %s6 = inlined_call_operand.hbm [shape: f32[3,64,64], index: 6, kind: input, shape index: {}]
  %s7 = inlined_call_operand.vmem [shape: f32[1,64], index: 7, kind: input, shape index: {}]
  %s8 = inlined_call_operand.vmem [shape: f32[1,64], index: 8, kind: input, shape index: {}]
  %s9 = inlined_call_operand.vmem [shape: f32[1,64], index: 9, kind: input, shape index: {}]
  %s10 = inlined_call_operand.vmem [shape: f32[1,64], index: 10, kind: input, shape index: {}]
  %s11 = inlined_call_operand.<no memory space> [shape: f32[1,1], index: 11, kind: input, shape index: {}]
  %s12 = inlined_call_operand.hbm [shape: f32[1,1,48], index: 12, kind: output, shape index: {}]
  %s13 = sld [smem:[#allocation0]]
  $region62: #{tpu_custom_call.1} parent=0
    _
  %s15 = ssub.s32 1, %s13
  %s16 = scalar_select 0, %s15, %s13
  %v17 = vstv %s11
  %18 = vst [vmem:[#allocation2] sm:$0x1] %v17
  $region1: #{tpu_custom_call.1} parent=0
    #allocation3 [shape = 'u8[98304]{0}', space=vmem, size = 0x18000, scoped, tag = 'input window, operand 6, single buffered']
    #allocation4 [shape = 's32[1]{0}', space=sflag, size = 0x4, scoped, tag = 'scoped memory for tpu_custom_call.1']
    #allocation5 [shape = 's32[1]{0}', space=sflag, size = 0x4, scoped, tag = 'scoped memory for tpu_custom_call.1']
    #allocation6 [shape = 'u8[512]{0}', space=vmem, size = 0x400, scoped, tag = 'output window, operand 0, single buffered']
    %19 = vsyncpa [#allocation4], 0
    %20 = vsyncpa [#allocation5], 0
    // Predicated region
    $region2: #{tpu_custom_call.1} parent=1 // pred_check
      _
    $region3: #{tpu_custom_call.1} parent=1 // pred_check_branch
      %22 = sbr.rel (0) target = $region5
    $region4: #{tpu_custom_call.1} parent=1 // pred_region
      _
    $region5: #{tpu_custom_call.1} parent=1 // pred_fallthru
      _
    // Predicated region
    $region6: #{tpu_custom_call.1} parent=1 // pred_check
      _
    $region7: #{tpu_custom_call.1} parent=1 // pred_check_branch
      %24 = sbr.rel (0) target = $region9
    $region8: #{tpu_custom_call.1} parent=1 // pred_region
      _
    $region9: #{tpu_custom_call.1} parent=1 // pred_fallthru
      _
    // Predicated region
    $region10: #{tpu_custom_call.1} parent=1 // pred_check
      _
    $region11: #{tpu_custom_call.1} parent=1 // pred_check_branch
      %26 = sbr.rel (0) target = $region13
    $region12: #{tpu_custom_call.1} parent=1 // pred_region
      _
    $region13: #{tpu_custom_call.1} parent=1 // pred_fallthru
      _
    // Predicated region
    $region14: #{tpu_custom_call.1} parent=1 // pred_check
      _
    $region15: #{tpu_custom_call.1} parent=1 // pred_check_branch
      %28 = sbr.rel (0) target = $region17
    $region16: #{tpu_custom_call.1} parent=1 // pred_region
      _
    $region17: #{tpu_custom_call.1} parent=1 // pred_fallthru
      _
    // Predicated region
    $region18: #{tpu_custom_call.1} parent=1 // pred_check
      _
    $region19: #{tpu_custom_call.1} parent=1 // pred_check_branch
      %30 = sbr.rel (0) target = $region21
    $region20: #{tpu_custom_call.1} parent=1 // pred_region
      _
    $region21: #{tpu_custom_call.1} parent=1 // pred_fallthru
      _
    // Predicated region
    $region22: #{tpu_custom_call.1} parent=1 // pred_check
      _
    $region23: #{tpu_custom_call.1} parent=1 // pred_check_branch
      %32 = sbr.rel (0) target = $region25
    $region24: #{tpu_custom_call.1} parent=1 // pred_region
      _
    $region25: #{tpu_custom_call.1} parent=1 // pred_fallthru
      _
    // Predicated region
    $region26: #{tpu_custom_call.1} parent=1 // pred_check
      _
    $region27: #{tpu_custom_call.1} parent=1 // pred_check_branch
      %34 = sbr.rel (0) target = $region29
    $region28: #{tpu_custom_call.1} parent=1 // pred_region
      %s36 = ssub.s32 3072, 3072
      %37 = vsyncadd [#allocation4], %s36
      %s38 = sshll.u32 [#allocation3], 4
      %s39 = int_to_ptr.vmem [resolvable:$true] %s38
      %44 = dma.hbm_to_vmem [thread:$0]  %s6, 3072, %s39, [#allocation4], 128, 128, 8
    $region29: #{tpu_custom_call.1} parent=1 // pred_fallthru
      _
    // Predicated region
    $region30: #{tpu_custom_call.1} parent=1 // pred_check
      _
    $region31: #{tpu_custom_call.1} parent=1 // pred_check_branch
      %46 = sbr.rel (0) target = $region33
    $region32: #{tpu_custom_call.1} parent=1 // pred_region
      _
    $region33: #{tpu_custom_call.1} parent=1 // pred_fallthru
      _
    // Predicated region
    $region34: #{tpu_custom_call.1} parent=1 // pred_check
      _
    $region35: #{tpu_custom_call.1} parent=1 // pred_check_branch
      %48 = sbr.rel (0) target = $region37
    $region36: #{tpu_custom_call.1} parent=1 // pred_region
      _
    $region37: #{tpu_custom_call.1} parent=1 // pred_fallthru
      _
    // Predicated region
    $region38: #{tpu_custom_call.1} parent=1 // pred_check
      _
    $region39: #{tpu_custom_call.1} parent=1 // pred_check_branch
      %50 = sbr.rel (0) target = $region41
    $region40: #{tpu_custom_call.1} parent=1 // pred_region
      _
    $region41: #{tpu_custom_call.1} parent=1 // pred_fallthru
      _
    // Predicated region
    $region42: #{tpu_custom_call.1} parent=1 // pred_check
      _
    $region43: #{tpu_custom_call.1} parent=1 // pred_check_branch
      %52 = sbr.rel (0) target = $region45
    $region44: #{tpu_custom_call.1} parent=1 // pred_region
      _
    $region45: #{tpu_custom_call.1} parent=1 // pred_fallthru
      _
    // Predicated region
    $region46: #{tpu_custom_call.1} parent=1 // pred_check
      _
    $region47: #{tpu_custom_call.1} parent=1 // pred_check_branch
      %54 = sbr.rel (0) target = $region49
    $region48: #{tpu_custom_call.1} parent=1 // pred_region
      _
    $region49: #{tpu_custom_call.1} parent=1 // pred_fallthru
      _
    // Predicated region
    $region50: #{tpu_custom_call.1} parent=1 // pred_check
      _
    $region51: #{tpu_custom_call.1} parent=1 // pred_check_branch
      %56 = sbr.rel (0) target = $region53
    $region52: #{tpu_custom_call.1} parent=1 // pred_region
      %57 = dma.done [#allocation4], 3072
    $region53: #{tpu_custom_call.1} parent=1 // pred_fallthru
      _
    %v58 = vld [vmem:[%s0] sm:$0xff]
    %v59 = vld [vmem:[%s0 + $0x8] sm:$0xff]
    %v60 = vld [vmem:[%s0 + $0x10] sm:$0xff]
    %v61 = vld [vmem:[%s0 + $0x18] sm:$0xff]
    %v62 = vld [vmem:[%s0 + $0x20] sm:$0xff]
    %v63 = vld [vmem:[%s0 + $0x28] sm:$0xff]
    %vm70 = vcmask 1040384
    %v71 = vrot.slane %v58, 7
    %v72 = vrot.slane %v59, 7
    %v73 = vsel %vm70, %v71, %v72
    %v74 = vrot.slane %v60, 7
    %v75 = vsel %vm70, %v72, %v74
    %v76 = vrot.slane %v61, 7
    %v77 = vsel %vm70, %v74, %v76
    %v78 = vrot.slane %v62, 7
    %v79 = vsel %vm70, %v76, %v78
    %v80 = vrot.slane %v63, 7
    %v81 = vsel %vm70, %v78, %v80
    %v83 = vsel %vm70, 0.0, %v71
    %v84 = vld [vmem:[%s2] sm:$0xff]
    %v85 = vld [vmem:[%s2 + $0x8] sm:$0xff]
    %v86 = vld [vmem:[%s2 + $0x10] sm:$0xff]
    %v87 = vld [vmem:[%s2 + $0x18] sm:$0xff]
    %s88 = scalar_lea.vmem %s2, 32
    %v89 = vld [vmem:[%s88] sm:$0xff]
    %v90 = vld [vmem:[%s88 + $0x8] sm:$0xff]
    %v91 = vld [vmem:[%s88 + $0x10] sm:$0xff]
    %v92 = vld [vmem:[%s88 + $0x18] sm:$0xff]
    %vm93 = vcmask 261120
    %v94 = vsel %vm93, %v58, 0
    %v96 = vsel %vm93, %v59, 0
    %v98 = vsel %vm93, %v60, 0
    %v100 = vsel %vm93, %v61, 0
    %v102 = vsel %vm93, %v62, 0
    %v104 = vsel %vm93, %v63, 0
    %106 = vmatprep.subr.mxu0 0.0
    %107 = vmatpush1.msra.mxu0 0.0
    %108 = vmatprep.subr.mxu0 0.0
    %109 = vmatpush1.msra.mxu0 0.0
    %110 = vmatprep.subr.mxu0 0.0
    %111 = vmatpush1.msra.mxu0 0.0
    %112 = vmatprep.subr.mxu0 0.0
    %113 = vmatpush1.msra.mxu0 0.0
    %114 = vmatprep.subr.mxu0 0.0
    %115 = vmatpush1.msra.mxu0 0.0
    %116 = vmatprep.subr.mxu0 0.0
    %117 = vmatpush1.msra.mxu0 0.0
    %118 = vmatprep.subr.mxu0 0.0
    %119 = vmatpush1.msra.mxu0 0.0
    %120 = vmatprep.subr.mxu0 0.0
    %121 = vmatpush1.msra.mxu0 0.0
    %122 = vmatprep.subr.mxu0 0.0
    %123 = vmatpush1.msra.mxu0 0.0
    %124 = vmatprep.subr.mxu0 0.0
    %125 = vmatpush1.msra.mxu0 0.0
    %126 = vmatprep.subr.mxu0 0.0
    %127 = vmatpush1.msra.mxu0 0.0
    %128 = vmatprep.subr.mxu0 0.0
    %129 = vmatpush1.msra.mxu0 0.0
    %130 = vmatprep.subr.mxu0 0.0
    %131 = vmatpush1.msra.mxu0 %v92
    %132 = vmatprep.subr.mxu0 0.0
    %133 = vmatpush1.msra.mxu0 %v91
    %134 = vmatprep.subr.mxu0 0.0
    %135 = vmatpush1.msra.mxu0 %v90
    %136 = vmatprep.subr.mxu0 0.0
    %137 = vmatpush1.msra.mxu0 %v89
    %138 = vmatprep.subr.mxu0 0.0
    %139 = vmatpush2.msra.mxu0 0.0
    %140 = vmatprep.subr.mxu0 0.0
    %141 = vmatpush2.msra.mxu0 0.0
    %142 = vmatprep.subr.mxu0 0.0
    %143 = vmatpush2.msra.mxu0 0.0
    %144 = vmatprep.subr.mxu0 0.0
    %145 = vmatpush2.msra.mxu0 0.0
    %146 = vmatprep.subr.mxu0 0.0
    %147 = vmatpush2.msra.mxu0 0.0
    %148 = vmatprep.subr.mxu0 0.0
    %149 = vmatpush2.msra.mxu0 0.0
    %150 = vmatprep.subr.mxu0 0.0
    %151 = vmatpush2.msra.mxu0 0.0
    %152 = vmatprep.subr.mxu0 0.0
    %153 = vmatpush2.msra.mxu0 0.0
    %154 = vmatprep.subr.mxu0 0.0
    %155 = vmatpush2.msra.mxu0 0.0
    %156 = vmatprep.subr.mxu0 0.0
    %157 = vmatpush2.msra.mxu0 0.0
    %158 = vmatprep.subr.mxu0 0.0
    %159 = vmatpush2.msra.mxu0 0.0
    %160 = vmatprep.subr.mxu0 0.0
    %161 = vmatpush2.msra.mxu0 0.0
    %162 = vmatprep.subr.mxu0 0.0
    %163 = vmatpush2.msra.mxu0 0.0
    %164 = vmatprep.subr.mxu0 0.0
    %165 = vmatpush2.msra.mxu0 0.0
    %166 = vmatprep.subr.mxu0 0.0
    %167 = vmatpush2.msra.mxu0 0.0
    %168 = vmatprep.subr.mxu0 0.0
    %169 = vmatpush2.msra.mxu0 0.0
    %170 = vmatprep.mubr.f32.mxu0 0.0
    %171 = vmatmul.mubr.f32.gmra.mxu0 %v94
    %v172 = vpop.f32.mrf.mxu0
    %v173 = vadd.f32 0.0, %v172
    %v174 = vpop.f32.mrf.mxu0
    %175 = vmatprep.mubr.f32.mxu0 0.0
    %176 = vmatmul.mubr.f32.gmra.mxu0 %v96
    %v177 = vpop.f32.mrf.mxu0
    %v178 = vadd.f32 0.0, %v177
    %v179 = vpop.f32.mrf.mxu0
    %180 = vmatprep.mubr.f32.mxu0 0.0
    %181 = vmatmul.mubr.f32.gmra.mxu0 %v98
    %v182 = vpop.f32.mrf.mxu0
    %v183 = vadd.f32 0.0, %v182
    %v184 = vpop.f32.mrf.mxu0
    %185 = vmatprep.mubr.f32.mxu0 0.0
    %186 = vmatmul.mubr.f32.gmra.mxu0 %v100
    %v187 = vpop.f32.mrf.mxu0
    %v188 = vadd.f32 0.0, %v187
    %v189 = vpop.f32.mrf.mxu0
    %190 = vmatprep.mubr.f32.mxu0 0.0
    %191 = vmatmul.mubr.f32.gmra.mxu0 %v102
    %v192 = vpop.f32.mrf.mxu0
    %v193 = vadd.f32 0.0, %v192
    %v194 = vpop.f32.mrf.mxu0
    %195 = vmatprep.mubr.f32.mxu0 0.0
    %196 = vmatmul.mubr.f32.gmra.mxu0 %v104
    %v197 = vpop.f32.mrf.mxu0
    %v198 = vadd.f32 0.0, %v197
    %v199 = vpop.f32.mrf.mxu0
    %200 = vdwg.mxu0
    %v202 = vsel %vm93, %v83, 0
    %v204 = vsel %vm93, %v73, 0
    %v206 = vsel %vm93, %v75, 0
    %v208 = vsel %vm93, %v77, 0
    %v210 = vsel %vm93, %v79, 0
    %v212 = vsel %vm93, %v81, 0
    %214 = vmatprep.subr.mxu0 0.0
    %215 = vmatpush1.msra.mxu0 0.0
    %216 = vmatprep.subr.mxu0 0.0
    %217 = vmatpush1.msra.mxu0 0.0
    %218 = vmatprep.subr.mxu0 0.0
    %219 = vmatpush1.msra.mxu0 0.0
    %220 = vmatprep.subr.mxu0 0.0
    %221 = vmatpush1.msra.mxu0 0.0
    %222 = vmatprep.subr.mxu0 0.0
    %223 = vmatpush1.msra.mxu0 0.0
    %224 = vmatprep.subr.mxu0 0.0
    %225 = vmatpush1.msra.mxu0 0.0
    %226 = vmatprep.subr.mxu0 0.0
    %227 = vmatpush1.msra.mxu0 0.0
    %228 = vmatprep.subr.mxu0 0.0
    %229 = vmatpush1.msra.mxu0 0.0
    %230 = vmatprep.subr.mxu0 0.0
    %231 = vmatpush1.msra.mxu0 0.0
    %232 = vmatprep.subr.mxu0 0.0
    %233 = vmatpush1.msra.mxu0 0.0
    %234 = vmatprep.subr.mxu0 0.0
    %235 = vmatpush1.msra.mxu0 0.0
    %236 = vmatprep.subr.mxu0 0.0
    %237 = vmatpush1.msra.mxu0 0.0
    %238 = vmatprep.subr.mxu0 0.0
    %239 = vmatpush1.msra.mxu0 %v87
    %240 = vmatprep.subr.mxu0 0.0
    %241 = vmatpush1.msra.mxu0 %v86
    %242 = vmatprep.subr.mxu0 0.0
    %243 = vmatpush1.msra.mxu0 %v85
    %244 = vmatprep.subr.mxu0 0.0
    %245 = vmatpush1.msra.mxu0 %v84
    %246 = vmatprep.subr.mxu0 0.0
    %247 = vmatpush2.msra.mxu0 0.0
    %248 = vmatprep.subr.mxu0 0.0
    %249 = vmatpush2.msra.mxu0 0.0
    %250 = vmatprep.subr.mxu0 0.0
    %251 = vmatpush2.msra.mxu0 0.0
    %252 = vmatprep.subr.mxu0 0.0
    %253 = vmatpush2.msra.mxu0 0.0
    %254 = vmatprep.subr.mxu0 0.0
    %255 = vmatpush2.msra.mxu0 0.0
    %256 = vmatprep.subr.mxu0 0.0
    %257 = vmatpush2.msra.mxu0 0.0
    %258 = vmatprep.subr.mxu0 0.0
    %259 = vmatpush2.msra.mxu0 0.0
    %260 = vmatprep.subr.mxu0 0.0
    %261 = vmatpush2.msra.mxu0 0.0
    %262 = vmatprep.subr.mxu0 0.0
    %263 = vmatpush2.msra.mxu0 0.0
    %264 = vmatprep.subr.mxu0 0.0
    %265 = vmatpush2.msra.mxu0 0.0
    %266 = vmatprep.subr.mxu0 0.0
    %267 = vmatpush2.msra.mxu0 0.0
    %268 = vmatprep.subr.mxu0 0.0
    %269 = vmatpush2.msra.mxu0 0.0
    %270 = vmatprep.subr.mxu0 0.0
    %271 = vmatpush2.msra.mxu0 0.0
    %272 = vmatprep.subr.mxu0 0.0
    %273 = vmatpush2.msra.mxu0 0.0
    %274 = vmatprep.subr.mxu0 0.0
    %275 = vmatpush2.msra.mxu0 0.0
    %276 = vmatprep.subr.mxu0 0.0
    %277 = vmatpush2.msra.mxu0 0.0
    %278 = vmatprep.mubr.f32.mxu0 0.0
    %279 = vmatmul.mubr.f32.gmra.mxu0 %v202
    %v280 = vpop.f32.mrf.mxu0
    %v281 = vadd.f32 %v173, %v280
    %v282 = vpop.f32.mrf.mxu0
    %283 = vmatprep.mubr.f32.mxu0 0.0
    %284 = vmatmul.mubr.f32.gmra.mxu0 %v204
    %v285 = vpop.f32.mrf.mxu0
    %v286 = vadd.f32 %v178, %v285
    %v287 = vpop.f32.mrf.mxu0
    %288 = vmatprep.mubr.f32.mxu0 0.0
    %289 = vmatmul.mubr.f32.gmra.mxu0 %v206
    %v290 = vpop.f32.mrf.mxu0
    %v291 = vadd.f32 %v183, %v290
    %v292 = vpop.f32.mrf.mxu0
    %293 = vmatprep.mubr.f32.mxu0 0.0
    %294 = vmatmul.mubr.f32.gmra.mxu0 %v208
    %v295 = vpop.f32.mrf.mxu0
    %v296 = vadd.f32 %v188, %v295
    %v297 = vpop.f32.mrf.mxu0
    %298 = vmatprep.mubr.f32.mxu0 0.0
    %299 = vmatmul.mubr.f32.gmra.mxu0 %v210
    %v300 = vpop.f32.mrf.mxu0
    %v301 = vadd.f32 %v193, %v300
    %v302 = vpop.f32.mrf.mxu0
    %303 = vmatprep.mubr.f32.mxu0 0.0
    %304 = vmatmul.mubr.f32.gmra.mxu0 %v212
    %v305 = vpop.f32.mrf.mxu0
    %v306 = vadd.f32 %v198, %v305
    %v307 = vpop.f32.mrf.mxu0
    %308 = vdwg.mxu0
    %vm309 = vcmask 1046528
    %v310 = vrot.slane %v58, 1
    %v311 = vrot.slane %v59, 1
    %v312 = vsel %vm309, %v310, %v311
    %v313 = vrot.slane %v60, 1
    %v314 = vsel %vm309, %v311, %v313
    %v315 = vrot.slane %v61, 1
    %v316 = vsel %vm309, %v313, %v315
    %v317 = vrot.slane %v62, 1
    %v318 = vsel %vm309, %v315, %v317
    %v319 = vrot.slane %v63, 1
    %v320 = vsel %vm309, %v317, %v319
    %v322 = vsel %vm309, %v319, 0.0
    %s323 = scalar_lea.vmem %s2, 64
    %v324 = vld [vmem:[%s323] sm:$0xff]
    %v325 = vld [vmem:[%s323 + $0x8] sm:$0xff]
    %v326 = vld [vmem:[%s323 + $0x10] sm:$0xff]
    %v327 = vld [vmem:[%s323 + $0x18] sm:$0xff]
    %v328 = vsel %vm93, %v312, 0
    %v330 = vsel %vm93, %v314, 0
    %v332 = vsel %vm93, %v316, 0
    %v334 = vsel %vm93, %v318, 0
    %v336 = vsel %vm93, %v320, 0
    %v339 = vsel %vm93, %v322, 0
    %341 = vmatprep.subr.mxu0 0.0
    %342 = vmatpush1.msra.mxu0 0.0
    %343 = vmatprep.subr.mxu0 0.0
    %344 = vmatpush1.msra.mxu0 0.0
    %345 = vmatprep.subr.mxu0 0.0
    %346 = vmatpush1.msra.mxu0 0.0
    %347 = vmatprep.subr.mxu0 0.0
    %348 = vmatpush1.msra.mxu0 0.0
    %349 = vmatprep.subr.mxu0 0.0
    %350 = vmatpush1.msra.mxu0 0.0
    %351 = vmatprep.subr.mxu0 0.0
    %352 = vmatpush1.msra.mxu0 0.0
    %353 = vmatprep.subr.mxu0 0.0
    %354 = vmatpush1.msra.mxu0 0.0
    %355 = vmatprep.subr.mxu0 0.0
    %356 = vmatpush1.msra.mxu0 0.0
    %357 = vmatprep.subr.mxu0 0.0
    %358 = vmatpush1.msra.mxu0 0.0
    %359 = vmatprep.subr.mxu0 0.0
    %360 = vmatpush1.msra.mxu0 0.0
    %361 = vmatprep.subr.mxu0 0.0
    %362 = vmatpush1.msra.mxu0 0.0
    %363 = vmatprep.subr.mxu0 0.0
    %364 = vmatpush1.msra.mxu0 0.0
    %365 = vmatprep.subr.mxu0 0.0
    %366 = vmatpush1.msra.mxu0 %v327
    %367 = vmatprep.subr.mxu0 0.0
    %368 = vmatpush1.msra.mxu0 %v326
    %369 = vmatprep.subr.mxu0 0.0
    %370 = vmatpush1.msra.mxu0 %v325
    %371 = vmatprep.subr.mxu0 0.0
    %372 = vmatpush1.msra.mxu0 %v324
    %373 = vmatprep.subr.mxu0 0.0
    %374 = vmatpush2.msra.mxu0 0.0
    %375 = vmatprep.subr.mxu0 0.0
    %376 = vmatpush2.msra.mxu0 0.0
    %377 = vmatprep.subr.mxu0 0.0
    %378 = vmatpush2.msra.mxu0 0.0
    %379 = vmatprep.subr.mxu0 0.0
    %380 = vmatpush2.msra.mxu0 0.0
    %381 = vmatprep.subr.mxu0 0.0
    %382 = vmatpush2.msra.mxu0 0.0
    %383 = vmatprep.subr.mxu0 0.0
    %384 = vmatpush2.msra.mxu0 0.0
    %385 = vmatprep.subr.mxu0 0.0
    %386 = vmatpush2.msra.mxu0 0.0
    %387 = vmatprep.subr.mxu0 0.0
    %388 = vmatpush2.msra.mxu0 0.0
    %389 = vmatprep.subr.mxu0 0.0
    %390 = vmatpush2.msra.mxu0 0.0
    %391 = vmatprep.subr.mxu0 0.0
    %392 = vmatpush2.msra.mxu0 0.0
    %393 = vmatprep.subr.mxu0 0.0
    %394 = vmatpush2.msra.mxu0 0.0
    %395 = vmatprep.subr.mxu0 0.0
    %396 = vmatpush2.msra.mxu0 0.0
    %397 = vmatprep.subr.mxu0 0.0
    %398 = vmatpush2.msra.mxu0 0.0
    %399 = vmatprep.subr.mxu0 0.0
    %400 = vmatpush2.msra.mxu0 0.0
    %401 = vmatprep.subr.mxu0 0.0
    %402 = vmatpush2.msra.mxu0 0.0
    %403 = vmatprep.subr.mxu0 0.0
    %404 = vmatpush2.msra.mxu0 0.0
    %405 = vmatprep.mubr.f32.mxu0 0.0
    %406 = vmatmul.mubr.f32.gmra.mxu0 %v328
    %v407 = vpop.f32.mrf.mxu0
    %v408 = vadd.f32 0.0, %v407
    %v409 = vpop.f32.mrf.mxu0
    %410 = vmatprep.mubr.f32.mxu0 0.0
    %411 = vmatmul.mubr.f32.gmra.mxu0 %v330
    %v412 = vpop.f32.mrf.mxu0
    %v413 = vadd.f32 0.0, %v412
    %v414 = vpop.f32.mrf.mxu0
    %415 = vmatprep.mubr.f32.mxu0 0.0
    %416 = vmatmul.mubr.f32.gmra.mxu0 %v332
    %v417 = vpop.f32.mrf.mxu0
    %v418 = vadd.f32 0.0, %v417
    %v419 = vpop.f32.mrf.mxu0
    %420 = vmatprep.mubr.f32.mxu0 0.0
    %421 = vmatmul.mubr.f32.gmra.mxu0 %v334
    %v422 = vpop.f32.mrf.mxu0
    %v423 = vadd.f32 0.0, %v422
    %v424 = vpop.f32.mrf.mxu0
    %425 = vmatprep.mubr.f32.mxu0 0.0
    %426 = vmatmul.mubr.f32.gmra.mxu0 %v336
    %v427 = vpop.f32.mrf.mxu0
    %v428 = vadd.f32 0.0, %v427
    %v429 = vpop.f32.mrf.mxu0
    %430 = vmatprep.mubr.f32.mxu0 0.0
    %431 = vmatmul.mubr.f32.gmra.mxu0 %v339
    %v432 = vpop.f32.mrf.mxu0
    %v433 = vadd.f32 0.0, %v432
    %v434 = vpop.f32.mrf.mxu0
    %435 = vdwg.mxu0
    %v436 = vadd.f32 %v281, %v408
    %v437 = vadd.f32 %v286, %v413
    %v438 = vadd.f32 %v291, %v418
    %v439 = vadd.f32 %v296, %v423
    %v440 = vadd.f32 %v301, %v428
    %v441 = vadd.f32 %v306, %v433
    %v442 = vld [vmem:[%s3] sm:$0x1]
    %v444 = vlaneseq
    %v445 = vshrl.u32 %v444, 7
    %v446 = vsub.s32 0, %v445
    %v447 = vrot.slane %v442, %v446
    %v449 = vadd.f32 %v436, %v447
    %v450 = vadd.f32 %v437, %v447
    %v451 = vadd.f32 %v438, %v447
    %v452 = vadd.f32 %v439, %v447
    %v453 = vadd.f32 %v440, %v447
    %v454 = vadd.f32 %v441, %v447
    %v455 = vmax.f32 %v449, 0.0
    %v456 = vmax.f32 %v450, 0.0
    %v457 = vmax.f32 %v451, 0.0
    %v458 = vmax.f32 %v452, 0.0
    %v459 = vmax.f32 %v453, 0.0
    %v460 = vmax.f32 %v454, 0.0
    %v461 = vld [vmem:[%s4] sm:$0x1]
    %v462 = vld [vmem:[%s5] sm:$0x1]
    %vm463 = vcmask 523264
    %v464 = vsel %vm463, %v455, 0.0
    %465 = vadd.xlane.f32.xlu0 %v464
    %v466 = vpop.xlane.xlu0 %465
    %v467 = vsel %vm463, %v456, 0.0
    %468 = vadd.xlane.f32.xlu0 %v467
    %v469 = vpop.xlane.xlu0 %468
    %v470 = vsel %vm463, %v457, 0.0
    %471 = vadd.xlane.f32.xlu0 %v470
    %v472 = vpop.xlane.xlu0 %471
    %v473 = vsel %vm463, %v458, 0.0
    %474 = vadd.xlane.f32.xlu0 %v473
    %v475 = vpop.xlane.xlu0 %474
    %v476 = vsel %vm463, %v459, 0.0
    %477 = vadd.xlane.f32.xlu0 %v476
    %v478 = vpop.xlane.xlu0 %477
    %v479 = vsel %vm463, %v460, 0.0
    %480 = vadd.xlane.f32.xlu0 %v479
    %v481 = vpop.xlane.xlu0 %480
    %v482 = vrcp.pop 64.0
    %v483 = vmul.f32 %v466, %v482
    %v484 = vmul.f32 %v469, %v482
    %v485 = vmul.f32 %v472, %v482
    %v486 = vmul.f32 %v475, %v482
    %v487 = vmul.f32 %v478, %v482
    %v488 = vmul.f32 %v481, %v482
    %v489 = vsub.f32 %v455, %v483
    %v490 = vsub.f32 %v456, %v484
    %v491 = vsub.f32 %v457, %v485
    %v492 = vsub.f32 %v458, %v486
    %v493 = vsub.f32 %v459, %v487
    %v494 = vsub.f32 %v460, %v488
    %v495 = vmul.f32 %v489, %v489
    %v496 = vmul.f32 %v490, %v490
    %v497 = vmul.f32 %v491, %v491
    %v498 = vmul.f32 %v492, %v492
    %v499 = vmul.f32 %v493, %v493
    %v500 = vmul.f32 %v494, %v494
    %v501 = vsel %vm463, %v495, 0.0
    %502 = vadd.xlane.f32.xlu0 %v501
    %v503 = vpop.xlane.xlu0 %502
    %v504 = vsel %vm463, %v496, 0.0
    %505 = vadd.xlane.f32.xlu0 %v504
    %v506 = vpop.xlane.xlu0 %505
    %v507 = vsel %vm463, %v497, 0.0
    %508 = vadd.xlane.f32.xlu0 %v507
    %v509 = vpop.xlane.xlu0 %508
    %v510 = vsel %vm463, %v498, 0.0
    %511 = vadd.xlane.f32.xlu0 %v510
    %v512 = vpop.xlane.xlu0 %511
    %v513 = vsel %vm463, %v499, 0.0
    %514 = vadd.xlane.f32.xlu0 %v513
    %v515 = vpop.xlane.xlu0 %514
    %v516 = vsel %vm463, %v500, 0.0
    %517 = vadd.xlane.f32.xlu0 %v516
    %v518 = vpop.xlane.xlu0 %517
    %v519 = vmul.f32 %v503, %v482
    %v520 = vmul.f32 %v506, %v482
    %v521 = vmul.f32 %v509, %v482
    %v522 = vmul.f32 %v512, %v482
    %v523 = vmul.f32 %v515, %v482
    %v524 = vmul.f32 %v518, %v482
    %v525 = vadd.f32 %v519, 1e-05
    %v526 = vadd.f32 %v520, 1e-05
    %v527 = vadd.f32 %v521, 1e-05
    %v528 = vadd.f32 %v522, 1e-05
    %v529 = vadd.f32 %v523, 1e-05
    %v530 = vadd.f32 %v524, 1e-05
    %v531 = vrsqrt.pop %v525
    %v532 = vrsqrt.pop %v526
    %v533 = vrsqrt.pop %v527
    %v534 = vrsqrt.pop %v528
    %v535 = vrsqrt.pop %v529
    %v536 = vrsqrt.pop %v530
    %v537 = vmul.f32 %v489, %v531
    %v538 = vmul.f32 %v490, %v532
    %v539 = vmul.f32 %v491, %v533
    %v540 = vmul.f32 %v492, %v534
    %v541 = vmul.f32 %v493, %v535
    %v542 = vmul.f32 %v494, %v536
    %v544 = vlaneseq
    %v545 = vshrl.u32 %v544, 7
    %v546 = vsub.s32 0, %v545
    %v547 = vrot.slane %v461, %v546
    %v549 = vmul.f32 %v537, %v547
    %v550 = vmul.f32 %v538, %v547
    %v551 = vmul.f32 %v539, %v547
    %v552 = vmul.f32 %v540, %v547
    %v553 = vmul.f32 %v541, %v547
    %v554 = vmul.f32 %v542, %v547
    %v556 = vlaneseq
    %v557 = vshrl.u32 %v556, 7
    %v558 = vsub.s32 0, %v557
    %v559 = vrot.slane %v462, %v558
    %v561 = vadd.f32 %v549, %v559
    %v562 = vadd.f32 %v550, %v559
    %v563 = vadd.f32 %v551, %v559
    %v564 = vadd.f32 %v552, %v559
    %v565 = vadd.f32 %v553, %v559
    %v566 = vadd.f32 %v554, %v559
    %v567 = vld [vmem:[%s1] sm:$0xff]
    %v568 = vld [vmem:[%s1 + $0x8] sm:$0xff]
    %v569 = vld [vmem:[%s1 + $0x10] sm:$0xff]
    %v570 = vld [vmem:[%s1 + $0x18] sm:$0xff]
    %v571 = vld [vmem:[%s1 + $0x20] sm:$0xff]
    %v572 = vld [vmem:[%s1 + $0x28] sm:$0xff]
    %574 = vset.pattern.permute.xlu0 0
    %575 = vperm.xlu0 %574, %v567
    %v576 = vpop.permute.xlu0 %575
    %579 = vset.pattern.permute.xlu0 0
    %580 = vperm.xlu0 %579, %v568
    %v581 = vpop.permute.xlu0 %580
    %584 = vset.pattern.permute.xlu0 0
    %585 = vperm.xlu0 %584, %v569
    %v586 = vpop.permute.xlu0 %585
    %589 = vset.pattern.permute.xlu0 0
    %590 = vperm.xlu0 %589, %v570
    %v591 = vpop.permute.xlu0 %590
    %594 = vset.pattern.permute.xlu0 0
    %595 = vperm.xlu0 %594, %v571
    %v596 = vpop.permute.xlu0 %595
    %599 = vset.pattern.permute.xlu0 0
    %600 = vperm.xlu0 %599, %v572
    %v601 = vpop.permute.xlu0 %600
    %v603 = vmul.f32 %v561, %v576
    %v604 = vmul.f32 %v562, %v581
    %v605 = vmul.f32 %v563, %v586
    %v606 = vmul.f32 %v564, %v591
    %v607 = vmul.f32 %v565, %v596
    %v608 = vmul.f32 %v566, %v601
    %v615 = vrot.slane %v603, 7
    %v616 = vrot.slane %v604, 7
    %v617 = vsel %vm70, %v615, %v616
    %v618 = vrot.slane %v605, 7
    %v619 = vsel %vm70, %v616, %v618
    %v620 = vrot.slane %v606, 7
    %v621 = vsel %vm70, %v618, %v620
    %v622 = vrot.slane %v607, 7
    %v623 = vsel %vm70, %v620, %v622
    %v624 = vrot.slane %v608, 7
    %v625 = vsel %vm70, %v622, %v624
    %v627 = vsel %vm70, 0.0, %v615
    %v628 = vld [vmem:[#allocation3] sm:$0xff]
    %v629 = vld [vmem:[#allocation3 + $0x8] sm:$0xff]
    %v630 = vld [vmem:[#allocation3 + $0x10] sm:$0xff]
    %v631 = vld [vmem:[#allocation3 + $0x18] sm:$0xff]
    %v632 = vld [vmem:[#allocation3 + $0x20] sm:$0xff]
    %v633 = vld [vmem:[#allocation3 + $0x28] sm:$0xff]
    %v634 = vld [vmem:[#allocation3 + $0x30] sm:$0xff]
    %v635 = vld [vmem:[#allocation3 + $0x38] sm:$0xff]
    %s636 = scalar_lea.vmem [#allocation3], 64
    %v637 = vld [vmem:[%s636] sm:$0xff]
    %v638 = vld [vmem:[%s636 + $0x8] sm:$0xff]
    %v639 = vld [vmem:[%s636 + $0x10] sm:$0xff]
    %v640 = vld [vmem:[%s636 + $0x18] sm:$0xff]
    %v641 = vld [vmem:[%s636 + $0x20] sm:$0xff]
    %v642 = vld [vmem:[%s636 + $0x28] sm:$0xff]
    %v643 = vld [vmem:[%s636 + $0x30] sm:$0xff]
    %v644 = vld [vmem:[%s636 + $0x38] sm:$0xff]
    %v645 = vsel %vm463, %v603, 0
    %v647 = vsel %vm463, %v604, 0
    %v649 = vsel %vm463, %v605, 0
    %v651 = vsel %vm463, %v606, 0
    %v653 = vsel %vm463, %v607, 0
    %v655 = vsel %vm463, %v608, 0
    %657 = vmatprep.subr.mxu0 0.0
    %658 = vmatpush1.msra.mxu0 0.0
    %659 = vmatprep.subr.mxu0 0.0
    %660 = vmatpush1.msra.mxu0 0.0
    %661 = vmatprep.subr.mxu0 0.0
    %662 = vmatpush1.msra.mxu0 0.0
    %663 = vmatprep.subr.mxu0 0.0
    %664 = vmatpush1.msra.mxu0 0.0
    %665 = vmatprep.subr.mxu0 0.0
    %666 = vmatpush1.msra.mxu0 0.0
    %667 = vmatprep.subr.mxu0 0.0
    %668 = vmatpush1.msra.mxu0 0.0
    %669 = vmatprep.subr.mxu0 0.0
    %670 = vmatpush1.msra.mxu0 0.0
    %671 = vmatprep.subr.mxu0 0.0
    %672 = vmatpush1.msra.mxu0 0.0
    %673 = vmatprep.subr.mxu0 0.0
    %674 = vmatpush1.msra.mxu0 %v644
    %675 = vmatprep.subr.mxu0 0.0
    %676 = vmatpush1.msra.mxu0 %v643
    %677 = vmatprep.subr.mxu0 0.0
    %678 = vmatpush1.msra.mxu0 %v642
    %679 = vmatprep.subr.mxu0 0.0
    %680 = vmatpush1.msra.mxu0 %v641
    %681 = vmatprep.subr.mxu0 0.0
    %682 = vmatpush1.msra.mxu0 %v640
    %683 = vmatprep.subr.mxu0 0.0
    %684 = vmatpush1.msra.mxu0 %v639
    %685 = vmatprep.subr.mxu0 0.0
    %686 = vmatpush1.msra.mxu0 %v638
    %687 = vmatprep.subr.mxu0 0.0
    %688 = vmatpush1.msra.mxu0 %v637
    %689 = vmatprep.subr.mxu0 0.0
    %690 = vmatpush2.msra.mxu0 0.0
    %691 = vmatprep.subr.mxu0 0.0
    %692 = vmatpush2.msra.mxu0 0.0
    %693 = vmatprep.subr.mxu0 0.0
    %694 = vmatpush2.msra.mxu0 0.0
    %695 = vmatprep.subr.mxu0 0.0
    %696 = vmatpush2.msra.mxu0 0.0
    %697 = vmatprep.subr.mxu0 0.0
    %698 = vmatpush2.msra.mxu0 0.0
    %699 = vmatprep.subr.mxu0 0.0
    %700 = vmatpush2.msra.mxu0 0.0
    %701 = vmatprep.subr.mxu0 0.0
    %702 = vmatpush2.msra.mxu0 0.0
    %703 = vmatprep.subr.mxu0 0.0
    %704 = vmatpush2.msra.mxu0 0.0
    %705 = vmatprep.subr.mxu0 0.0
    %706 = vmatpush2.msra.mxu0 0.0
    %707 = vmatprep.subr.mxu0 0.0
    %708 = vmatpush2.msra.mxu0 0.0
    %709 = vmatprep.subr.mxu0 0.0
    %710 = vmatpush2.msra.mxu0 0.0
    %711 = vmatprep.subr.mxu0 0.0
    %712 = vmatpush2.msra.mxu0 0.0
    %713 = vmatprep.subr.mxu0 0.0
    %714 = vmatpush2.msra.mxu0 0.0
    %715 = vmatprep.subr.mxu0 0.0
    %716 = vmatpush2.msra.mxu0 0.0
    %717 = vmatprep.subr.mxu0 0.0
    %718 = vmatpush2.msra.mxu0 0.0
    %719 = vmatprep.subr.mxu0 0.0
    %720 = vmatpush2.msra.mxu0 0.0
    %721 = vmatprep.mubr.f32.mxu0 0.0
    %722 = vmatmul.mubr.f32.gmra.mxu0 %v645
    %v723 = vpop.f32.mrf.mxu0
    %v724 = vadd.f32 0.0, %v723
    %v725 = vpop.f32.mrf.mxu0
    %726 = vmatprep.mubr.f32.mxu0 0.0
    %727 = vmatmul.mubr.f32.gmra.mxu0 %v647
    %v728 = vpop.f32.mrf.mxu0
    %v729 = vadd.f32 0.0, %v728
    %v730 = vpop.f32.mrf.mxu0
    %731 = vmatprep.mubr.f32.mxu0 0.0
    %732 = vmatmul.mubr.f32.gmra.mxu0 %v649
    %v733 = vpop.f32.mrf.mxu0
    %v734 = vadd.f32 0.0, %v733
    %v735 = vpop.f32.mrf.mxu0
    %736 = vmatprep.mubr.f32.mxu0 0.0
    %737 = vmatmul.mubr.f32.gmra.mxu0 %v651
    %v738 = vpop.f32.mrf.mxu0
    %v739 = vadd.f32 0.0, %v738
    %v740 = vpop.f32.mrf.mxu0
    %741 = vmatprep.mubr.f32.mxu0 0.0
    %742 = vmatmul.mubr.f32.gmra.mxu0 %v653
    %v743 = vpop.f32.mrf.mxu0
    %v744 = vadd.f32 0.0, %v743
    %v745 = vpop.f32.mrf.mxu0
    %746 = vmatprep.mubr.f32.mxu0 0.0
    %747 = vmatmul.mubr.f32.gmra.mxu0 %v655
    %v748 = vpop.f32.mrf.mxu0
    %v749 = vadd.f32 0.0, %v748
    %v750 = vpop.f32.mrf.mxu0
    %751 = vdwg.mxu0
    %v753 = vsel %vm463, %v627, 0
    %v755 = vsel %vm463, %v617, 0
    %v757 = vsel %vm463, %v619, 0
    %v759 = vsel %vm463, %v621, 0
    %v761 = vsel %vm463, %v623, 0
    %v763 = vsel %vm463, %v625, 0
    %765 = vmatprep.subr.mxu0 0.0
    %766 = vmatpush1.msra.mxu0 0.0
    %767 = vmatprep.subr.mxu0 0.0
    %768 = vmatpush1.msra.mxu0 0.0
    %769 = vmatprep.subr.mxu0 0.0
    %770 = vmatpush1.msra.mxu0 0.0
    %771 = vmatprep.subr.mxu0 0.0
    %772 = vmatpush1.msra.mxu0 0.0
    %773 = vmatprep.subr.mxu0 0.0
    %774 = vmatpush1.msra.mxu0 0.0
    %775 = vmatprep.subr.mxu0 0.0
    %776 = vmatpush1.msra.mxu0 0.0
    %777 = vmatprep.subr.mxu0 0.0
    %778 = vmatpush1.msra.mxu0 0.0
    %779 = vmatprep.subr.mxu0 0.0
    %780 = vmatpush1.msra.mxu0 0.0
    %781 = vmatprep.subr.mxu0 0.0
    %782 = vmatpush1.msra.mxu0 %v635
    %783 = vmatprep.subr.mxu0 0.0
    %784 = vmatpush1.msra.mxu0 %v634
    %785 = vmatprep.subr.mxu0 0.0
    %786 = vmatpush1.msra.mxu0 %v633
    %787 = vmatprep.subr.mxu0 0.0
    %788 = vmatpush1.msra.mxu0 %v632
    %789 = vmatprep.subr.mxu0 0.0
    %790 = vmatpush1.msra.mxu0 %v631
    %791 = vmatprep.subr.mxu0 0.0
    %792 = vmatpush1.msra.mxu0 %v630
    %793 = vmatprep.subr.mxu0 0.0
    %794 = vmatpush1.msra.mxu0 %v629
    %795 = vmatprep.subr.mxu0 0.0
    %796 = vmatpush1.msra.mxu0 %v628
    %797 = vmatprep.subr.mxu0 0.0
    %798 = vmatpush2.msra.mxu0 0.0
    %799 = vmatprep.subr.mxu0 0.0
    %800 = vmatpush2.msra.mxu0 0.0
    %801 = vmatprep.subr.mxu0 0.0
    %802 = vmatpush2.msra.mxu0 0.0
    %803 = vmatprep.subr.mxu0 0.0
    %804 = vmatpush2.msra.mxu0 0.0
    %805 = vmatprep.subr.mxu0 0.0
    %806 = vmatpush2.msra.mxu0 0.0
    %807 = vmatprep.subr.mxu0 0.0
    %808 = vmatpush2.msra.mxu0 0.0
    %809 = vmatprep.subr.mxu0 0.0
    %810 = vmatpush2.msra.mxu0 0.0
    %811 = vmatprep.subr.mxu0 0.0
    %812 = vmatpush2.msra.mxu0 0.0
    %813 = vmatprep.subr.mxu0 0.0
    %814 = vmatpush2.msra.mxu0 0.0
    %815 = vmatprep.subr.mxu0 0.0
    %816 = vmatpush2.msra.mxu0 0.0
    %817 = vmatprep.subr.mxu0 0.0
    %818 = vmatpush2.msra.mxu0 0.0
    %819 = vmatprep.subr.mxu0 0.0
    %820 = vmatpush2.msra.mxu0 0.0
    %821 = vmatprep.subr.mxu0 0.0
    %822 = vmatpush2.msra.mxu0 0.0
    %823 = vmatprep.subr.mxu0 0.0
    %824 = vmatpush2.msra.mxu0 0.0
    %825 = vmatprep.subr.mxu0 0.0
    %826 = vmatpush2.msra.mxu0 0.0
    %827 = vmatprep.subr.mxu0 0.0
    %828 = vmatpush2.msra.mxu0 0.0
    %829 = vmatprep.mubr.f32.mxu0 0.0
    %830 = vmatmul.mubr.f32.gmra.mxu0 %v753
    %v831 = vpop.f32.mrf.mxu0
    %v832 = vadd.f32 %v724, %v831
    %v833 = vpop.f32.mrf.mxu0
    %834 = vmatprep.mubr.f32.mxu0 0.0
    %835 = vmatmul.mubr.f32.gmra.mxu0 %v755
    %v836 = vpop.f32.mrf.mxu0
    %v837 = vadd.f32 %v729, %v836
    %v838 = vpop.f32.mrf.mxu0
    %839 = vmatprep.mubr.f32.mxu0 0.0
    %840 = vmatmul.mubr.f32.gmra.mxu0 %v757
    %v841 = vpop.f32.mrf.mxu0
    %v842 = vadd.f32 %v734, %v841
    %v843 = vpop.f32.mrf.mxu0
    %844 = vmatprep.mubr.f32.mxu0 0.0
    %845 = vmatmul.mubr.f32.gmra.mxu0 %v759
    %v846 = vpop.f32.mrf.mxu0
    %v847 = vadd.f32 %v739, %v846
    %v848 = vpop.f32.mrf.mxu0
    %849 = vmatprep.mubr.f32.mxu0 0.0
    %850 = vmatmul.mubr.f32.gmra.mxu0 %v761
    %v851 = vpop.f32.mrf.mxu0
    %v852 = vadd.f32 %v744, %v851
    %v853 = vpop.f32.mrf.mxu0
    %854 = vmatprep.mubr.f32.mxu0 0.0
    %855 = vmatmul.mubr.f32.gmra.mxu0 %v763
    %v856 = vpop.f32.mrf.mxu0
    %v857 = vadd.f32 %v749, %v856
    %v858 = vpop.f32.mrf.mxu0
    %859 = vdwg.mxu0
    %v860 = vrot.slane %v603, 1
    %v861 = vrot.slane %v604, 1
    %v862 = vsel %vm309, %v860, %v861
    %v863 = vrot.slane %v605, 1
    %v864 = vsel %vm309, %v861, %v863
    %v865 = vrot.slane %v606, 1
    %v866 = vsel %vm309, %v863, %v865
    %v867 = vrot.slane %v607, 1
    %v868 = vsel %vm309, %v865, %v867
    %v869 = vrot.slane %v608, 1
    %v870 = vsel %vm309, %v867, %v869
    %v872 = vsel %vm309, %v869, 0.0
    %s873 = scalar_lea.vmem [#allocation3], 128
    %v874 = vld [vmem:[%s873] sm:$0xff]
    %v875 = vld [vmem:[%s873 + $0x8] sm:$0xff]
    %v876 = vld [vmem:[%s873 + $0x10] sm:$0xff]
    %v877 = vld [vmem:[%s873 + $0x18] sm:$0xff]
    %v878 = vld [vmem:[%s873 + $0x20] sm:$0xff]
    %v879 = vld [vmem:[%s873 + $0x28] sm:$0xff]
    %v880 = vld [vmem:[%s873 + $0x30] sm:$0xff]
    %v881 = vld [vmem:[%s873 + $0x38] sm:$0xff]
    %v882 = vsel %vm463, %v862, 0
    %v884 = vsel %vm463, %v864, 0
    %v886 = vsel %vm463, %v866, 0
    %v888 = vsel %vm463, %v868, 0
    %v890 = vsel %vm463, %v870, 0
    %v893 = vsel %vm463, %v872, 0
    %895 = vmatprep.subr.mxu0 0.0
    %896 = vmatpush1.msra.mxu0 0.0
    %897 = vmatprep.subr.mxu0 0.0
    %898 = vmatpush1.msra.mxu0 0.0
    %899 = vmatprep.subr.mxu0 0.0
    %900 = vmatpush1.msra.mxu0 0.0
    %901 = vmatprep.subr.mxu0 0.0
    %902 = vmatpush1.msra.mxu0 0.0
    %903 = vmatprep.subr.mxu0 0.0
    %904 = vmatpush1.msra.mxu0 0.0
    %905 = vmatprep.subr.mxu0 0.0
    %906 = vmatpush1.msra.mxu0 0.0
    %907 = vmatprep.subr.mxu0 0.0
    %908 = vmatpush1.msra.mxu0 0.0
    %909 = vmatprep.subr.mxu0 0.0
    %910 = vmatpush1.msra.mxu0 0.0
    %911 = vmatprep.subr.mxu0 0.0
    %912 = vmatpush1.msra.mxu0 %v881
    %913 = vmatprep.subr.mxu0 0.0
    %914 = vmatpush1.msra.mxu0 %v880
    %915 = vmatprep.subr.mxu0 0.0
    %916 = vmatpush1.msra.mxu0 %v879
    %917 = vmatprep.subr.mxu0 0.0
    %918 = vmatpush1.msra.mxu0 %v878
    %919 = vmatprep.subr.mxu0 0.0
    %920 = vmatpush1.msra.mxu0 %v877
    %921 = vmatprep.subr.mxu0 0.0
    %922 = vmatpush1.msra.mxu0 %v876
    %923 = vmatprep.subr.mxu0 0.0
    %924 = vmatpush1.msra.mxu0 %v875
    %925 = vmatprep.subr.mxu0 0.0
    %926 = vmatpush1.msra.mxu0 %v874
    %927 = vmatprep.subr.mxu0 0.0
    %928 = vmatpush2.msra.mxu0 0.0
    %929 = vmatprep.subr.mxu0 0.0
    %930 = vmatpush2.msra.mxu0 0.0
    %931 = vmatprep.subr.mxu0 0.0
    %932 = vmatpush2.msra.mxu0 0.0
    %933 = vmatprep.subr.mxu0 0.0
    %934 = vmatpush2.msra.mxu0 0.0
    %935 = vmatprep.subr.mxu0 0.0
    %936 = vmatpush2.msra.mxu0 0.0
    %937 = vmatprep.subr.mxu0 0.0
    %938 = vmatpush2.msra.mxu0 0.0
    %939 = vmatprep.subr.mxu0 0.0
    %940 = vmatpush2.msra.mxu0 0.0
    %941 = vmatprep.subr.mxu0 0.0
    %942 = vmatpush2.msra.mxu0 0.0
    %943 = vmatprep.subr.mxu0 0.0
    %944 = vmatpush2.msra.mxu0 0.0
    %945 = vmatprep.subr.mxu0 0.0
    %946 = vmatpush2.msra.mxu0 0.0
    %947 = vmatprep.subr.mxu0 0.0
    %948 = vmatpush2.msra.mxu0 0.0
    %949 = vmatprep.subr.mxu0 0.0
    %950 = vmatpush2.msra.mxu0 0.0
    %951 = vmatprep.subr.mxu0 0.0
    %952 = vmatpush2.msra.mxu0 0.0
    %953 = vmatprep.subr.mxu0 0.0
    %954 = vmatpush2.msra.mxu0 0.0
    %955 = vmatprep.subr.mxu0 0.0
    %956 = vmatpush2.msra.mxu0 0.0
    %957 = vmatprep.subr.mxu0 0.0
    %958 = vmatpush2.msra.mxu0 0.0
    %959 = vmatprep.mubr.f32.mxu0 0.0
    %960 = vmatmul.mubr.f32.gmra.mxu0 %v882
    %v961 = vpop.f32.mrf.mxu0
    %v962 = vadd.f32 0.0, %v961
    %v963 = vpop.f32.mrf.mxu0
    %964 = vmatprep.mubr.f32.mxu0 0.0
    %965 = vmatmul.mubr.f32.gmra.mxu0 %v884
    %v966 = vpop.f32.mrf.mxu0
    %v967 = vadd.f32 0.0, %v966
    %v968 = vpop.f32.mrf.mxu0
    %969 = vmatprep.mubr.f32.mxu0 0.0
    %970 = vmatmul.mubr.f32.gmra.mxu0 %v886
    %v971 = vpop.f32.mrf.mxu0
    %v972 = vadd.f32 0.0, %v971
    %v973 = vpop.f32.mrf.mxu0
    %974 = vmatprep.mubr.f32.mxu0 0.0
    %975 = vmatmul.mubr.f32.gmra.mxu0 %v888
    %v976 = vpop.f32.mrf.mxu0
    %v977 = vadd.f32 0.0, %v976
    %v978 = vpop.f32.mrf.mxu0
    %979 = vmatprep.mubr.f32.mxu0 0.0
    %980 = vmatmul.mubr.f32.gmra.mxu0 %v890
    %v981 = vpop.f32.mrf.mxu0
    %v982 = vadd.f32 0.0, %v981
    %v983 = vpop.f32.mrf.mxu0
    %984 = vmatprep.mubr.f32.mxu0 0.0
    %985 = vmatmul.mubr.f32.gmra.mxu0 %v893
    %v986 = vpop.f32.mrf.mxu0
    %v987 = vadd.f32 0.0, %v986
    %v988 = vpop.f32.mrf.mxu0
    %989 = vdwg.mxu0
    %v990 = vadd.f32 %v832, %v962
    %v991 = vadd.f32 %v837, %v967
    %v992 = vadd.f32 %v842, %v972
    %v993 = vadd.f32 %v847, %v977
    %v994 = vadd.f32 %v852, %v982
    %v995 = vadd.f32 %v857, %v987
    %v996 = vld [vmem:[%s7] sm:$0x1]
    %v998 = vlaneseq
    %v999 = vshrl.u32 %v998, 7
    %v1000 = vsub.s32 0, %v999
    %v1001 = vrot.slane %v996, %v1000
    %v1003 = vadd.f32 %v990, %v1001
    %v1004 = vadd.f32 %v991, %v1001
    %v1005 = vadd.f32 %v992, %v1001
    %v1006 = vadd.f32 %v993, %v1001
    %v1007 = vadd.f32 %v994, %v1001
    %v1008 = vadd.f32 %v995, %v1001
    %v1009 = vmax.f32 %v1003, 0.0
    %v1010 = vmax.f32 %v1004, 0.0
    %v1011 = vmax.f32 %v1005, 0.0
    %v1012 = vmax.f32 %v1006, 0.0
    %v1013 = vmax.f32 %v1007, 0.0
    %v1014 = vmax.f32 %v1008, 0.0
    %v1015 = vld [vmem:[%s8] sm:$0x1]
    %v1016 = vld [vmem:[%s9] sm:$0x1]
    %v1017 = vsel %vm463, %v1009, 0.0
    %1018 = vadd.xlane.f32.xlu0 %v1017
    %v1019 = vpop.xlane.xlu0 %1018
    %v1020 = vsel %vm463, %v1010, 0.0
    %1021 = vadd.xlane.f32.xlu0 %v1020
    %v1022 = vpop.xlane.xlu0 %1021
    %v1023 = vsel %vm463, %v1011, 0.0
    %1024 = vadd.xlane.f32.xlu0 %v1023
    %v1025 = vpop.xlane.xlu0 %1024
    %v1026 = vsel %vm463, %v1012, 0.0
    %1027 = vadd.xlane.f32.xlu0 %v1026
    %v1028 = vpop.xlane.xlu0 %1027
    %v1029 = vsel %vm463, %v1013, 0.0
    %1030 = vadd.xlane.f32.xlu0 %v1029
    %v1031 = vpop.xlane.xlu0 %1030
    %v1032 = vsel %vm463, %v1014, 0.0
    %1033 = vadd.xlane.f32.xlu0 %v1032
    %v1034 = vpop.xlane.xlu0 %1033
    %v1035 = vmul.f32 %v1019, %v482
    %v1036 = vmul.f32 %v1022, %v482
    %v1037 = vmul.f32 %v1025, %v482
    %v1038 = vmul.f32 %v1028, %v482
    %v1039 = vmul.f32 %v1031, %v482
    %v1040 = vmul.f32 %v1034, %v482
    %v1041 = vsub.f32 %v1009, %v1035
    %v1042 = vsub.f32 %v1010, %v1036
    %v1043 = vsub.f32 %v1011, %v1037
    %v1044 = vsub.f32 %v1012, %v1038
    %v1045 = vsub.f32 %v1013, %v1039
    %v1046 = vsub.f32 %v1014, %v1040
    %v1047 = vmul.f32 %v1041, %v1041
    %v1048 = vmul.f32 %v1042, %v1042
    %v1049 = vmul.f32 %v1043, %v1043
    %v1050 = vmul.f32 %v1044, %v1044
    %v1051 = vmul.f32 %v1045, %v1045
    %v1052 = vmul.f32 %v1046, %v1046
    %v1053 = vsel %vm463, %v1047, 0.0
    %1054 = vadd.xlane.f32.xlu0 %v1053
    %v1055 = vpop.xlane.xlu0 %1054
    %v1056 = vsel %vm463, %v1048, 0.0
    %1057 = vadd.xlane.f32.xlu0 %v1056
    %v1058 = vpop.xlane.xlu0 %1057
    %v1059 = vsel %vm463, %v1049, 0.0
    %1060 = vadd.xlane.f32.xlu0 %v1059
    %v1061 = vpop.xlane.xlu0 %1060
    %v1062 = vsel %vm463, %v1050, 0.0
    %1063 = vadd.xlane.f32.xlu0 %v1062
    %v1064 = vpop.xlane.xlu0 %1063
    %v1065 = vsel %vm463, %v1051, 0.0
    %1066 = vadd.xlane.f32.xlu0 %v1065
    %v1067 = vpop.xlane.xlu0 %1066
    %v1068 = vsel %vm463, %v1052, 0.0
    %1069 = vadd.xlane.f32.xlu0 %v1068
    %v1070 = vpop.xlane.xlu0 %1069
    %v1071 = vmul.f32 %v1055, %v482
    %v1072 = vmul.f32 %v1058, %v482
    %v1073 = vmul.f32 %v1061, %v482
    %v1074 = vmul.f32 %v1064, %v482
    %v1075 = vmul.f32 %v1067, %v482
    %v1076 = vmul.f32 %v1070, %v482
    %v1077 = vadd.f32 %v1071, 1e-05
    %v1078 = vadd.f32 %v1072, 1e-05
    %v1079 = vadd.f32 %v1073, 1e-05
    %v1080 = vadd.f32 %v1074, 1e-05
    %v1081 = vadd.f32 %v1075, 1e-05
    %v1082 = vadd.f32 %v1076, 1e-05
    %v1083 = vrsqrt.pop %v1077
    %v1084 = vrsqrt.pop %v1078
    %v1085 = vrsqrt.pop %v1079
    %v1086 = vrsqrt.pop %v1080
    %v1087 = vrsqrt.pop %v1081
    %v1088 = vrsqrt.pop %v1082
    %v1089 = vmul.f32 %v1041, %v1083
    %v1090 = vmul.f32 %v1042, %v1084
    %v1091 = vmul.f32 %v1043, %v1085
    %v1092 = vmul.f32 %v1044, %v1086
    %v1093 = vmul.f32 %v1045, %v1087
    %v1094 = vmul.f32 %v1046, %v1088
    %v1096 = vlaneseq
    %v1097 = vshrl.u32 %v1096, 7
    %v1098 = vsub.s32 0, %v1097
    %v1099 = vrot.slane %v1015, %v1098
    %v1101 = vmul.f32 %v1089, %v1099
    %v1102 = vmul.f32 %v1090, %v1099
    %v1103 = vmul.f32 %v1091, %v1099
    %v1104 = vmul.f32 %v1092, %v1099
    %v1105 = vmul.f32 %v1093, %v1099
    %v1106 = vmul.f32 %v1094, %v1099
    %v1108 = vlaneseq
    %v1109 = vshrl.u32 %v1108, 7
    %v1110 = vsub.s32 0, %v1109
    %v1111 = vrot.slane %v1016, %v1110
    %v1113 = vadd.f32 %v1101, %v1111
    %v1114 = vadd.f32 %v1102, %v1111
    %v1115 = vadd.f32 %v1103, %v1111
    %v1116 = vadd.f32 %v1104, %v1111
    %v1117 = vadd.f32 %v1105, %v1111
    %v1118 = vadd.f32 %v1106, %v1111
    %v1119 = vld [vmem:[%s10] sm:$0x1]
    %v1121 = vlaneseq
    %v1122 = vshrl.u32 %v1121, 7
    %v1123 = vsub.s32 0, %v1122
    %v1124 = vrot.slane %v1119, %v1123
    %v1126 = vmul.f32 %v1113, %v1124
    %v1127 = vmul.f32 %v1114, %v1124
    %v1128 = vmul.f32 %v1115, %v1124
    %v1129 = vmul.f32 %v1116, %v1124
    %v1130 = vmul.f32 %v1117, %v1124
    %v1131 = vmul.f32 %v1118, %v1124
    %v1132 = vsel %vm463, %v1126, 0.0
    %1133 = vadd.xlane.f32.xlu0 %v1132
    %v1134 = vpop.xlane.xlu0 %1133
    %v1135 = vsel %vm463, %v1127, 0.0
    %1136 = vadd.xlane.f32.xlu0 %v1135
    %v1137 = vpop.xlane.xlu0 %1136
    %v1138 = vsel %vm463, %v1128, 0.0
    %1139 = vadd.xlane.f32.xlu0 %v1138
    %v1140 = vpop.xlane.xlu0 %1139
    %v1141 = vsel %vm463, %v1129, 0.0
    %1142 = vadd.xlane.f32.xlu0 %v1141
    %v1143 = vpop.xlane.xlu0 %1142
    %v1144 = vsel %vm463, %v1130, 0.0
    %1145 = vadd.xlane.f32.xlu0 %v1144
    %v1146 = vpop.xlane.xlu0 %1145
    %v1147 = vsel %vm463, %v1131, 0.0
    %1148 = vadd.xlane.f32.xlu0 %v1147
    %v1149 = vpop.xlane.xlu0 %1148
    %v1150 = vld [vmem:[#allocation2] sm:$0x1]
    %v1152 = vlaneseq
    %v1153 = vshrl.u32 %v1152, 7
    %v1154 = vsub.s32 0, %v1153
    %v1155 = vrot.slane %v1150, %v1154
    %v1157 = vadd.f32 %v1134, %v1155
    %v1158 = vadd.f32 %v1137, %v1155
    %v1159 = vadd.f32 %v1140, %v1155
    %v1160 = vadd.f32 %v1143, %v1155
    %v1161 = vadd.f32 %v1146, %v1155
    %v1162 = vadd.f32 %v1149, %v1155
    %1169 = vset.pattern.permute.xlu0 0
    %1170 = vperm.xlu0 %1169, %v1157
    %v1171 = vpop.permute.xlu0 %1170
    %1172 = vset.pattern.permute.xlu0 0
    %1173 = vperm.xlu0 %1172, %v1158
    %v1174 = vpop.permute.xlu0 %1173
    %1175 = vset.pattern.permute.xlu0 0
    %1176 = vperm.xlu0 %1175, %v1159
    %v1177 = vpop.permute.xlu0 %1176
    %1178 = vset.pattern.permute.xlu0 0
    %1179 = vperm.xlu0 %1178, %v1160
    %v1180 = vpop.permute.xlu0 %1179
    %1181 = vset.pattern.permute.xlu0 0
    %1182 = vperm.xlu0 %1181, %v1161
    %v1183 = vpop.permute.xlu0 %1182
    %1184 = vset.pattern.permute.xlu0 0
    %1185 = vperm.xlu0 %1184, %v1162
    %v1186 = vpop.permute.xlu0 %1185
    %v1187 = vlaneseq
    %v1188 = vand.u32 %v1187, 127
    %v1189 = vlaneseq
    %v1190 = vshrl.u32 %v1189, 7
    %v1191 = vsub.s32 %v1188, %v1190
    %v1192 = vrot.slane %v1171, %v1191
    %v1193 = vadd.s32 %v1188, 4294967288
    %v1194 = vlaneseq
    %v1195 = vshrl.u32 %v1194, 7
    %v1196 = vsub.s32 %v1193, %v1195
    %v1197 = vrot.slane %v1174, %v1196
    %vm1198 = vcmask 130112
    %v1199 = vsel %vm1198, %v1197, %v1192
    %v1200 = vadd.s32 %v1188, 4294967280
    %v1201 = vlaneseq
    %v1202 = vshrl.u32 %v1201, 7
    %v1203 = vsub.s32 %v1200, %v1202
    %v1204 = vrot.slane %v1177, %v1203
    %vm1205 = vcmask 195712
    %v1206 = vsel %vm1205, %v1204, %v1199
    %v1207 = vadd.s32 %v1188, 4294967272
    %v1208 = vlaneseq
    %v1209 = vshrl.u32 %v1208, 7
    %v1210 = vsub.s32 %v1207, %v1209
    %v1211 = vrot.slane %v1180, %v1210
    %vm1212 = vcmask 261312
    %v1213 = vsel %vm1212, %v1211, %v1206
    %v1214 = vadd.s32 %v1188, 4294967264
    %v1215 = vlaneseq
    %v1216 = vshrl.u32 %v1215, 7
    %v1217 = vsub.s32 %v1214, %v1216
    %v1218 = vrot.slane %v1183, %v1217
    %vm1219 = vcmask 326912
    %v1220 = vsel %vm1219, %v1218, %v1213
    %v1221 = vadd.s32 %v1188, 4294967256
    %v1222 = vlaneseq
    %v1223 = vshrl.u32 %v1222, 7
    %v1224 = vsub.s32 %v1221, %v1223
    %v1225 = vrot.slane %v1186, %v1224
    %vm1226 = vcmask 392512
    %v1227 = vsel %vm1226, %v1225, %v1220
    %vm1229 = vcmask 385024
    %1230 = vst.msk [vmem:[#allocation6] sm:$0x1] %vm1229, %v1227
    // Predicated region
    $region54: #{tpu_custom_call.1} parent=1 // pred_check
      _
    $region55: #{tpu_custom_call.1} parent=1 // pred_check_branch
      %1232 = sbr.rel (0) target = $region57
    $region56: #{tpu_custom_call.1} parent=1 // pred_region
      %s1234 = ssub.s32 16, 16
      %1235 = vsyncadd [#allocation5], %s1234
      %s1237 = sshll.u32 [#allocation6], 4
      %s1238 = int_to_ptr.vmem [resolvable:$true] %s1237
      %1240 = dma.vmem_to_hbm [thread:$0]  %s1238, 16, %s12, [#allocation5]
    $region57: #{tpu_custom_call.1} parent=1 // pred_fallthru
      _
    // Predicated region
    $region58: #{tpu_custom_call.1} parent=1 // pred_check
      _
    $region59: #{tpu_custom_call.1} parent=1 // pred_check_branch
      %1242 = sbr.rel (0) target = $region61
    $region60: #{tpu_custom_call.1} parent=1 // pred_region
      %1243 = dma.done [#allocation5], 16
    $region61: #{tpu_custom_call.1} parent=1 // pred_fallthru
      _
    %1244 = vsyncpa [#allocation4], 1
    %1245 = vsyncpa [#allocation5], 1

</llo_original>
